<compile_context>
chip_gen: v5e
topology: v5e:2x2
jax: 0.10.0
libtpu: 0.0.40
codegen_flags: <defaults>
</compile_context>

<pallas_src>
import jax
import jax.numpy as jnp
from jax import lax
from jax.experimental import pallas as pl
from jax.experimental.pallas import tpu as pltpu

_EPS = 1e-5  # PyTorch BatchNorm default eps


def _vmem():
    return pl.BlockSpec(memory_space=pltpu.MemorySpace.VMEM)


# -----------------------------------------------------------------------------
# Single fused forward kernel.
# -----------------------------------------------------------------------------
def _net_fused_kernel(
    x_ref,     # (N, 28, 28)   input (C=1 squeezed)
    w1_ref,    # (140, 240)    conv1 band weight: rows (kh, in_col), cols (ow, oc)
    b1_ref,    # (1, 240)      conv1 bias tiled over ow
    w2_ref,    # (600, 160)    conv2 band weight: rows (kh, in_col, cin), cols (ow2, oc)
    b2_ref,    # (1, 160)      conv2 bias tiled over ow2
    g2_ref,    # (1, 160)      BN2d gamma tiled over ow2
    bt2_ref,   # (1, 160)      BN2d beta  tiled over ow2
    wfc1_ref,  # (320, 50)     dense1 weight, rows in (h, w, c) order
    bfc1_ref,  # (1, 50)
    g1_ref,    # (1, 50)       BN1d gamma
    bt1_ref,   # (1, 50)       BN1d beta
    wfc2_ref,  # (50, 10)
    bfc2_ref,  # (1, 10)
    o_ref,     # (N, 10)       log-probs
):
    f32 = jnp.float32
    n = x_ref.shape[0]

    # ---- conv1 (1 -> 10, k=5, valid): ONE matmul, K = 5*28 = 140.
    # cols1[(n, oh), kh*28 + iw] = x[n, oh + kh, iw]
    x = x_ref[...]                                                    # (N, 28, 28)
    cols1 = jnp.concatenate([x[:, kh:kh + 24, :] for kh in range(5)], axis=-1)
    cols1 = cols1.reshape(n * 24, 5 * 28)                             # lane dim unchanged
    acc1 = jnp.dot(cols1, w1_ref[...],
                   preferred_element_type=f32) + b1_ref[...]          # (N*24, 240), lane = ow*10+oc
    acc1 = acc1.reshape(n, 24, 240)

    # ---- maxpool 2x2/2 + ReLU, entirely on values in vregs.
    hm = jnp.concatenate(
        [jnp.maximum(acc1[:, 2 * i:2 * i + 1, :], acc1[:, 2 * i + 1:2 * i + 2, :])
         for i in range(12)], axis=1)                                  # (N, 12, 240)
    p1 = jnp.concatenate(
        [jnp.maximum(hm[:, :, 20 * j:20 * j + 10], hm[:, :, 20 * j + 10:20 * j + 20])
         for j in range(12)], axis=-1)                                 # (N, 12, 120), lane = w*10+c
    p1 = jnp.maximum(p1, 0.0)

    # ---- conv2 (10 -> 20, k=5, valid): ONE matmul, K = 5*12*10 = 600.
    # cols2[(n, oh2), kh*120 + iw*10 + cin] = p1[n, oh2 + kh, iw, cin]
    cols2 = jnp.concatenate([p1[:, kh:kh + 8, :] for kh in range(5)], axis=-1)
    cols2 = cols2.reshape(n * 8, 5 * 120)                              # (N*8, 600)
    h2 = jnp.dot(cols2, w2_ref[...],
                 preferred_element_type=f32) + b2_ref[...]             # (N*8, 160), lane = ow2*20+oc

    # ---- BatchNorm2d, training mode: stats over (N, H, W), biased variance.
    cnt = float(n * 64)
    ch_sum = h2[:, 0:20]
    for j in range(1, 8):
        ch_sum = ch_sum + h2[:, 20 * j:20 * j + 20]                    # fold ow2 lane-blocks
    mean_c = jnp.sum(ch_sum, axis=0, keepdims=True) * (1.0 / cnt)      # (1, 20)
    mean_b = jnp.concatenate([mean_c] * 8, axis=1)                     # (1, 160)
    d = h2 - mean_b
    sq = d * d
    sq_sum = sq[:, 0:20]
    for j in range(1, 8):
        sq_sum = sq_sum + sq[:, 20 * j:20 * j + 20]
    var_c = jnp.sum(sq_sum, axis=0, keepdims=True) * (1.0 / cnt)       # (1, 20)
    var_b = jnp.concatenate([var_c] * 8, axis=1)                       # (1, 160)
    h2n = d * lax.rsqrt(var_b + _EPS) * g2_ref[...] + bt2_ref[...]     # (N*8, 160)

    # ---- maxpool 2x2/2 + ReLU in vregs (h-pairs = adjacent rows, w-pairs =
    #      adjacent 20-lane blocks), then flatten + dense1 as ONE K=320 matmul.
    hm2 = jnp.concatenate(
        [jnp.maximum(h2n[2 * i:2 * i + 1, :], h2n[2 * i + 1:2 * i + 2, :])
         for i in range(n * 4)], axis=0)                               # (N*4, 160), row = (n, hp)
    p2 = jnp.concatenate(
        [jnp.maximum(hm2[:, 40 * j:40 * j + 20], hm2[:, 40 * j + 20:40 * j + 40])
         for j in range(4)], axis=-1)                                  # (N*4, 80), lane = wp*20+oc
    p2 = jnp.maximum(p2, 0.0)
    # flatten to (N, 320) in (h, w, c) lane order (matches packed wfc1 rows)
    flat = jnp.concatenate(
        [jnp.concatenate([p2[nn * 4 + hh:nn * 4 + hh + 1, :] for hh in range(4)], axis=-1)
         for nn in range(n)], axis=0)                                  # (N, 320)
    h = jnp.dot(flat, wfc1_ref[...],
                preferred_element_type=f32) + bfc1_ref[...]            # (N, 50)

    # ---- BatchNorm1d (training mode, whole batch) + ReLU.
    mean1 = jnp.mean(h, axis=0, keepdims=True)
    var1 = jnp.mean((h - mean1) * (h - mean1), axis=0, keepdims=True)
    h = (h - mean1) * lax.rsqrt(var1 + _EPS) * g1_ref[...] + bt1_ref[...]
    h = jnp.maximum(h, 0.0)

    # ---- dense2 + ReLU + log_softmax (lane axis).
    z = jnp.dot(h, wfc2_ref[...], preferred_element_type=f32) + bfc2_ref[...]
    z = jnp.maximum(z, 0.0)
    m = jnp.max(z, axis=-1, keepdims=True)
    lse = m + jnp.log(jnp.sum(jnp.exp(z - m), axis=-1, keepdims=True))
    o_ref[...] = z - lse


# -----------------------------------------------------------------------------
# Wrapper: one pallas_call for the whole forward pass (no grid, whole-array
# VMEM operands -- per review, the kernel is launch-latency bound).
# -----------------------------------------------------------------------------
@jax.jit
def net_forward(x_nchw, kp):
    n = x_nchw.shape[0]
    assert x_nchw.shape[1:] == (1, 28, 28), "view(-1, 320) requires 1x28x28 inputs"
    x = x_nchw.reshape(n, 28, 28).astype(jnp.float32)   # squeeze C=1 (free reshape)
    args = (x, kp["w1"], kp["b1"], kp["w2"], kp["b2"], kp["g2"], kp["bt2"],
            kp["wfc1"], kp["bfc1"], kp["g1"], kp["bt1"], kp["wfc2"], kp["bfc2"])
    return pl.pallas_call(
        _net_fused_kernel,
        out_shape=jax.ShapeDtypeStruct((n, 10), jnp.float32),
        in_specs=[_vmem() for _ in args],
        out_specs=_vmem(),
    )(*args)


# -----------------------------------------------------------------------------
# Parameter packing: fold each conv into a single "band" weight matrix so the
# kernel does one lane-dense matmul per conv, and fold the PyTorch NCHW
# view(-1, 320) into the dense1 weight row order.
# -----------------------------------------------------------------------------
def _fold_conv_band(w_hwio, in_w, out_w):
    """(KH, KW, cin, cout) HWIO weight -> (KH*in_w*cin, out_w*cout) matrix.

    With cols[(n, oh), kh*in_w*cin + iw*cin + ci] = x[n, oh+kh, iw, ci], the
    product cols @ band is the valid conv output, lanes ordered (ow, cout).
    """
    kh_n, kw_n, cin, cout = w_hwio.shape
    kh = jnp.arange(kh_n)[:, None, None, None, None]
    iw = jnp.arange(in_w)[None, :, None, None, None]
    ci = jnp.arange(cin)[None, None, :, None, None]
    ow = jnp.arange(out_w)[None, None, None, :, None]
    co = jnp.arange(cout)[None, None, None, None, :]
    kw = iw - ow
    valid = (kw >= 0) & (kw < kw_n)
    vals = w_hwio[kh, jnp.clip(kw, 0, kw_n - 1), ci, co]
    vals = jnp.where(valid, vals, 0.0)
    return vals.reshape(kh_n * in_w * cin, out_w * cout).astype(jnp.float32)


def pack_params(p):
    kp = {}
    kp["w1"] = _fold_conv_band(p["w_conv1"], in_w=28, out_w=24)        # (140, 240)
    kp["b1"] = jnp.tile(p["b_conv1"], 24).reshape(1, 240)
    kp["w2"] = _fold_conv_band(p["w_conv2"], in_w=12, out_w=8)         # (600, 160)
    kp["b2"] = jnp.tile(p["b_conv2"], 8).reshape(1, 160)
    kp["g2"] = jnp.tile(p["g_bn2"], 8).reshape(1, 160)
    kp["bt2"] = jnp.tile(p["beta_bn2"], 8).reshape(1, 160)
    # PyTorch rows are (c, h, w); the kernel flattens in (h, w, c) order.
    kp["wfc1"] = (p["w_fc1"].reshape(20, 4, 4, 50)
                  .transpose(1, 2, 0, 3).reshape(320, 50))
    kp["bfc1"] = p["b_fc1"].reshape(1, 50)
    kp["g1"] = p["g_bn1d"].reshape(1, 50)
    kp["bt1"] = p["beta_bn1d"].reshape(1, 50)
    kp["wfc2"] = p["w_fc2"]
    kp["bfc2"] = p["b_fc2"].reshape(1, 10)
    return kp


def init_params(key):
    ks = jax.random.split(key, 6)
    p = {}
    p["w_conv1"] = jax.random.normal(ks[0], (5, 5, 1, 10), jnp.float32) * 0.1    # HWIO
    p["b_conv1"] = jnp.linspace(-0.1, 0.1, 10, dtype=jnp.float32)
    p["w_conv2"] = jax.random.normal(ks[1], (5, 5, 10, 20), jnp.float32) * 0.05  # HWIO
    p["b_conv2"] = jnp.linspace(-0.1, 0.1, 20, dtype=jnp.float32)
    p["g_bn2"] = jnp.ones((20,), jnp.float32)
    p["beta_bn2"] = jnp.zeros((20,), jnp.float32)
    # dense1 weight kept in PyTorch row order: row = c*16 + h*4 + w
    p["w_fc1"] = jax.random.normal(ks[2], (320, 50), jnp.float32) * 0.05
    p["b_fc1"] = jax.random.normal(ks[3], (50,), jnp.float32) * 0.05
    p["g_bn1d"] = jnp.ones((50,), jnp.float32)
    p["beta_bn1d"] = jnp.zeros((50,), jnp.float32)
    p["w_fc2"] = jax.random.normal(ks[4], (50, 10), jnp.float32) * 0.1
    p["b_fc2"] = jax.random.normal(ks[5], (10,), jnp.float32) * 0.1
    return p


# -----------------------------------------------------------------------------
# Pure-JAX reference (faithful training-mode PyTorch forward) for cross-check.
# -----------------------------------------------------------------------------
def net_reference(x_nchw, p):
    hi = lax.Precision.HIGHEST
    dn = ("NHWC", "HWIO", "NHWC")
    x = jnp.transpose(x_nchw, (0, 2, 3, 1)).astype(jnp.float32)
    n = x.shape[0]

    y = lax.conv_general_dilated(x, p["w_conv1"], (1, 1), "VALID",
                                 dimension_numbers=dn, precision=hi) + p["b_conv1"]
    y = jnp.maximum(jnp.max(y.reshape(n, 12, 2, 12, 2, 10), axis=(2, 4)), 0.0)

    y = lax.conv_general_dilated(y, p["w_conv2"], (1, 1), "VALID",
                                 dimension_numbers=dn, precision=hi) + p["b_conv2"]
    mean = jnp.mean(y, axis=(0, 1, 2), keepdims=True)
    var = jnp.mean((y - mean) ** 2, axis=(0, 1, 2), keepdims=True)
    y = (y - mean) * lax.rsqrt(var + _EPS) * p["g_bn2"] + p["beta_bn2"]
    y = jnp.maximum(jnp.max(y.reshape(n, 4, 2, 4, 2, 20), axis=(2, 4)), 0.0)

    flat = jnp.transpose(y, (0, 3, 1, 2)).reshape(n, 320)   # PyTorch NCHW view(-1, 320)
    h = jnp.dot(flat, p["w_fc1"], precision=hi) + p["b_fc1"]
    mean = jnp.mean(h, axis=0, keepdims=True)
    var = jnp.mean((h - mean) ** 2, axis=0, keepdims=True)
    h = (h - mean) * lax.rsqrt(var + _EPS) * p["g_bn1d"] + p["beta_bn1d"]
    h = jnp.maximum(h, 0.0)
    z = jnp.maximum(jnp.dot(h, p["w_fc2"], precision=hi) + p["b_fc2"], 0.0)
    return jax.nn.log_softmax(z, axis=-1)


if __name__ == "__main__":
    key = jax.random.PRNGKey(0)
    k_x, k_p = jax.random.split(key)
    # Input shape is forced to 1x28x28 by view(-1, 320) in the reference module.
    x = jax.random.normal(k_x, (2, 1, 28, 28), jnp.float32)
    params = init_params(k_p)
    kparams = pack_params(params)

    out = jax.block_until_ready(net_forward(x, kparams))
    ref = jax.block_until_ready(net_reference(x, params))

    assert out.shape == (2, 10)
    assert bool(jnp.all(jnp.isfinite(out)))
    # rows of exp(log_softmax) must sum to 1
    assert bool(jnp.allclose(jnp.sum(jnp.exp(out), axis=1), 1.0, atol=1e-4))
    # match the pure-JAX reference (tolerance covers MXU f32 pass decomposition)
    assert bool(jnp.allclose(out, ref, atol=2e-2, rtol=2e-2))
    print("KERNEL_OK")
</pallas_src>

<mosaic_0001>
module attributes {stable_mosaic.version = 11 : i64} {
  func.func @_net_fused_kernel(%arg0: memref<2x28x28xf32, #tpu.memory_space<vmem>>, %arg1: memref<140x240xf32, #tpu.memory_space<vmem>>, %arg2: memref<1x240xf32, #tpu.memory_space<vmem>>, %arg3: memref<600x160xf32, #tpu.memory_space<vmem>>, %arg4: memref<1x160xf32, #tpu.memory_space<vmem>>, %arg5: memref<1x160xf32, #tpu.memory_space<vmem>>, %arg6: memref<1x160xf32, #tpu.memory_space<vmem>>, %arg7: memref<320x50xf32, #tpu.memory_space<vmem>>, %arg8: memref<1x50xf32, #tpu.memory_space<vmem>>, %arg9: memref<1x50xf32, #tpu.memory_space<vmem>>, %arg10: memref<1x50xf32, #tpu.memory_space<vmem>>, %arg11: memref<50x10xf32, #tpu.memory_space<vmem>>, %arg12: memref<1x10xf32, #tpu.memory_space<vmem>>, %arg13: memref<2x10xf32, #tpu.memory_space<vmem>>) attributes {dimension_semantics = [], scalar_prefetch = 0 : i64, scratch_operands = 0 : i64, tpu.core_type = #tpu.core_type<tc>} {
    %c0 = arith.constant 0 : index
    %c0_0 = arith.constant 0 : index
    %c0_1 = arith.constant 0 : index
    %0 = vector.load %arg0[%c0, %c0_0, %c0_1] : memref<2x28x28xf32, #tpu.memory_space<vmem>>, vector<2x28x28xf32>
    %1 = vector.extract_strided_slice %0 {offsets = [0, 0, 0], sizes = [2, 24, 28], strides = [1, 1, 1]} : vector<2x28x28xf32> to vector<2x24x28xf32>
    %2 = vector.extract_strided_slice %0 {offsets = [0, 1, 0], sizes = [2, 24, 28], strides = [1, 1, 1]} : vector<2x28x28xf32> to vector<2x24x28xf32>
    %3 = vector.extract_strided_slice %0 {offsets = [0, 2, 0], sizes = [2, 24, 28], strides = [1, 1, 1]} : vector<2x28x28xf32> to vector<2x24x28xf32>
    %4 = vector.extract_strided_slice %0 {offsets = [0, 3, 0], sizes = [2, 24, 28], strides = [1, 1, 1]} : vector<2x28x28xf32> to vector<2x24x28xf32>
    %5 = vector.extract_strided_slice %0 {offsets = [0, 4, 0], sizes = [2, 24, 28], strides = [1, 1, 1]} : vector<2x28x28xf32> to vector<2x24x28xf32>
    %6 = tpu.concatenate %1, %2, %3, %4, %5 in 2 : vector<2x24x28xf32>, vector<2x24x28xf32>, vector<2x24x28xf32>, vector<2x24x28xf32>, vector<2x24x28xf32> -> vector<2x24x140xf32>
    %7 = vector.shape_cast %6 : vector<2x24x140xf32> to vector<48x140xf32>
    %c0_2 = arith.constant 0 : index
    %c0_3 = arith.constant 0 : index
    %8 = vector.load %arg1[%c0_2, %c0_3] : memref<140x240xf32, #tpu.memory_space<vmem>>, vector<140x240xf32>
    %cst = arith.constant dense<0.000000e+00> : vector<48x240xf32>
    %9 = tpu.matmul %7, %8, %cst {dimension_numbers = #tpu.dot_dimension_numbers<[1], [0], [0], [1], [0, 0, 1, 1], [], []>} : vector<48x140xf32>, vector<140x240xf32>, vector<48x240xf32> -> vector<48x240xf32>
    %c0_4 = arith.constant 0 : index
    %c0_5 = arith.constant 0 : index
    %10 = vector.load %arg2[%c0_4, %c0_5] : memref<1x240xf32, #tpu.memory_space<vmem>>, vector<1x240xf32>
    %11 = vector.broadcast %10 : vector<1x240xf32> to vector<48x240xf32>
    %12 = arith.addf %9, %11 : vector<48x240xf32>
    %13 = vector.shape_cast %12 : vector<48x240xf32> to vector<2x24x240xf32>
    %14 = vector.extract_strided_slice %13 {offsets = [0, 0, 0], sizes = [2, 1, 240], strides = [1, 1, 1]} : vector<2x24x240xf32> to vector<2x1x240xf32>
    %15 = vector.extract_strided_slice %13 {offsets = [0, 1, 0], sizes = [2, 1, 240], strides = [1, 1, 1]} : vector<2x24x240xf32> to vector<2x1x240xf32>
    %16 = arith.maximumf %14, %15 : vector<2x1x240xf32>
    %17 = vector.extract_strided_slice %13 {offsets = [0, 2, 0], sizes = [2, 1, 240], strides = [1, 1, 1]} : vector<2x24x240xf32> to vector<2x1x240xf32>
    %18 = vector.extract_strided_slice %13 {offsets = [0, 3, 0], sizes = [2, 1, 240], strides = [1, 1, 1]} : vector<2x24x240xf32> to vector<2x1x240xf32>
    %19 = arith.maximumf %17, %18 : vector<2x1x240xf32>
    %20 = vector.extract_strided_slice %13 {offsets = [0, 4, 0], sizes = [2, 1, 240], strides = [1, 1, 1]} : vector<2x24x240xf32> to vector<2x1x240xf32>
    %21 = vector.extract_strided_slice %13 {offsets = [0, 5, 0], sizes = [2, 1, 240], strides = [1, 1, 1]} : vector<2x24x240xf32> to vector<2x1x240xf32>
    %22 = arith.maximumf %20, %21 : vector<2x1x240xf32>
    %23 = vector.extract_strided_slice %13 {offsets = [0, 6, 0], sizes = [2, 1, 240], strides = [1, 1, 1]} : vector<2x24x240xf32> to vector<2x1x240xf32>
    %24 = vector.extract_strided_slice %13 {offsets = [0, 7, 0], sizes = [2, 1, 240], strides = [1, 1, 1]} : vector<2x24x240xf32> to vector<2x1x240xf32>
    %25 = arith.maximumf %23, %24 : vector<2x1x240xf32>
    %26 = vector.extract_strided_slice %13 {offsets = [0, 8, 0], sizes = [2, 1, 240], strides = [1, 1, 1]} : vector<2x24x240xf32> to vector<2x1x240xf32>
    %27 = vector.extract_strided_slice %13 {offsets = [0, 9, 0], sizes = [2, 1, 240], strides = [1, 1, 1]} : vector<2x24x240xf32> to vector<2x1x240xf32>
    %28 = arith.maximumf %26, %27 : vector<2x1x240xf32>
    %29 = vector.extract_strided_slice %13 {offsets = [0, 10, 0], sizes = [2, 1, 240], strides = [1, 1, 1]} : vector<2x24x240xf32> to vector<2x1x240xf32>
    %30 = vector.extract_strided_slice %13 {offsets = [0, 11, 0], sizes = [2, 1, 240], strides = [1, 1, 1]} : vector<2x24x240xf32> to vector<2x1x240xf32>
    %31 = arith.maximumf %29, %30 : vector<2x1x240xf32>
    %32 = vector.extract_strided_slice %13 {offsets = [0, 12, 0], sizes = [2, 1, 240], strides = [1, 1, 1]} : vector<2x24x240xf32> to vector<2x1x240xf32>
    %33 = vector.extract_strided_slice %13 {offsets = [0, 13, 0], sizes = [2, 1, 240], strides = [1, 1, 1]} : vector<2x24x240xf32> to vector<2x1x240xf32>
    %34 = arith.maximumf %32, %33 : vector<2x1x240xf32>
    %35 = vector.extract_strided_slice %13 {offsets = [0, 14, 0], sizes = [2, 1, 240], strides = [1, 1, 1]} : vector<2x24x240xf32> to vector<2x1x240xf32>
    %36 = vector.extract_strided_slice %13 {offsets = [0, 15, 0], sizes = [2, 1, 240], strides = [1, 1, 1]} : vector<2x24x240xf32> to vector<2x1x240xf32>
    %37 = arith.maximumf %35, %36 : vector<2x1x240xf32>
    %38 = vector.extract_strided_slice %13 {offsets = [0, 16, 0], sizes = [2, 1, 240], strides = [1, 1, 1]} : vector<2x24x240xf32> to vector<2x1x240xf32>
    %39 = vector.extract_strided_slice %13 {offsets = [0, 17, 0], sizes = [2, 1, 240], strides = [1, 1, 1]} : vector<2x24x240xf32> to vector<2x1x240xf32>
    %40 = arith.maximumf %38, %39 : vector<2x1x240xf32>
    %41 = vector.extract_strided_slice %13 {offsets = [0, 18, 0], sizes = [2, 1, 240], strides = [1, 1, 1]} : vector<2x24x240xf32> to vector<2x1x240xf32>
    %42 = vector.extract_strided_slice %13 {offsets = [0, 19, 0], sizes = [2, 1, 240], strides = [1, 1, 1]} : vector<2x24x240xf32> to vector<2x1x240xf32>
    %43 = arith.maximumf %41, %42 : vector<2x1x240xf32>
    %44 = vector.extract_strided_slice %13 {offsets = [0, 20, 0], sizes = [2, 1, 240], strides = [1, 1, 1]} : vector<2x24x240xf32> to vector<2x1x240xf32>
    %45 = vector.extract_strided_slice %13 {offsets = [0, 21, 0], sizes = [2, 1, 240], strides = [1, 1, 1]} : vector<2x24x240xf32> to vector<2x1x240xf32>
    %46 = arith.maximumf %44, %45 : vector<2x1x240xf32>
    %47 = vector.extract_strided_slice %13 {offsets = [0, 22, 0], sizes = [2, 1, 240], strides = [1, 1, 1]} : vector<2x24x240xf32> to vector<2x1x240xf32>
    %48 = vector.extract_strided_slice %13 {offsets = [0, 23, 0], sizes = [2, 1, 240], strides = [1, 1, 1]} : vector<2x24x240xf32> to vector<2x1x240xf32>
    %49 = arith.maximumf %47, %48 : vector<2x1x240xf32>
    %50 = tpu.concatenate %16, %19, %22, %25, %28, %31, %34, %37, %40, %43, %46, %49 in 1 : vector<2x1x240xf32>, vector<2x1x240xf32>, vector<2x1x240xf32>, vector<2x1x240xf32>, vector<2x1x240xf32>, vector<2x1x240xf32>, vector<2x1x240xf32>, vector<2x1x240xf32>, vector<2x1x240xf32>, vector<2x1x240xf32>, vector<2x1x240xf32>, vector<2x1x240xf32> -> vector<2x12x240xf32>
    %51 = vector.extract_strided_slice %50 {offsets = [0, 0, 0], sizes = [2, 12, 10], strides = [1, 1, 1]} : vector<2x12x240xf32> to vector<2x12x10xf32>
    %52 = vector.extract_strided_slice %50 {offsets = [0, 0, 10], sizes = [2, 12, 10], strides = [1, 1, 1]} : vector<2x12x240xf32> to vector<2x12x10xf32>
    %53 = arith.maximumf %51, %52 : vector<2x12x10xf32>
    %54 = vector.extract_strided_slice %50 {offsets = [0, 0, 20], sizes = [2, 12, 10], strides = [1, 1, 1]} : vector<2x12x240xf32> to vector<2x12x10xf32>
    %55 = vector.extract_strided_slice %50 {offsets = [0, 0, 30], sizes = [2, 12, 10], strides = [1, 1, 1]} : vector<2x12x240xf32> to vector<2x12x10xf32>
    %56 = arith.maximumf %54, %55 : vector<2x12x10xf32>
    %57 = vector.extract_strided_slice %50 {offsets = [0, 0, 40], sizes = [2, 12, 10], strides = [1, 1, 1]} : vector<2x12x240xf32> to vector<2x12x10xf32>
    %58 = vector.extract_strided_slice %50 {offsets = [0, 0, 50], sizes = [2, 12, 10], strides = [1, 1, 1]} : vector<2x12x240xf32> to vector<2x12x10xf32>
    %59 = arith.maximumf %57, %58 : vector<2x12x10xf32>
    %60 = vector.extract_strided_slice %50 {offsets = [0, 0, 60], sizes = [2, 12, 10], strides = [1, 1, 1]} : vector<2x12x240xf32> to vector<2x12x10xf32>
    %61 = vector.extract_strided_slice %50 {offsets = [0, 0, 70], sizes = [2, 12, 10], strides = [1, 1, 1]} : vector<2x12x240xf32> to vector<2x12x10xf32>
    %62 = arith.maximumf %60, %61 : vector<2x12x10xf32>
    %63 = vector.extract_strided_slice %50 {offsets = [0, 0, 80], sizes = [2, 12, 10], strides = [1, 1, 1]} : vector<2x12x240xf32> to vector<2x12x10xf32>
    %64 = vector.extract_strided_slice %50 {offsets = [0, 0, 90], sizes = [2, 12, 10], strides = [1, 1, 1]} : vector<2x12x240xf32> to vector<2x12x10xf32>
    %65 = arith.maximumf %63, %64 : vector<2x12x10xf32>
    %66 = vector.extract_strided_slice %50 {offsets = [0, 0, 100], sizes = [2, 12, 10], strides = [1, 1, 1]} : vector<2x12x240xf32> to vector<2x12x10xf32>
    %67 = vector.extract_strided_slice %50 {offsets = [0, 0, 110], sizes = [2, 12, 10], strides = [1, 1, 1]} : vector<2x12x240xf32> to vector<2x12x10xf32>
    %68 = arith.maximumf %66, %67 : vector<2x12x10xf32>
    %69 = vector.extract_strided_slice %50 {offsets = [0, 0, 120], sizes = [2, 12, 10], strides = [1, 1, 1]} : vector<2x12x240xf32> to vector<2x12x10xf32>
    %70 = vector.extract_strided_slice %50 {offsets = [0, 0, 130], sizes = [2, 12, 10], strides = [1, 1, 1]} : vector<2x12x240xf32> to vector<2x12x10xf32>
    %71 = arith.maximumf %69, %70 : vector<2x12x10xf32>
    %72 = vector.extract_strided_slice %50 {offsets = [0, 0, 140], sizes = [2, 12, 10], strides = [1, 1, 1]} : vector<2x12x240xf32> to vector<2x12x10xf32>
    %73 = vector.extract_strided_slice %50 {offsets = [0, 0, 150], sizes = [2, 12, 10], strides = [1, 1, 1]} : vector<2x12x240xf32> to vector<2x12x10xf32>
    %74 = arith.maximumf %72, %73 : vector<2x12x10xf32>
    %75 = vector.extract_strided_slice %50 {offsets = [0, 0, 160], sizes = [2, 12, 10], strides = [1, 1, 1]} : vector<2x12x240xf32> to vector<2x12x10xf32>
    %76 = vector.extract_strided_slice %50 {offsets = [0, 0, 170], sizes = [2, 12, 10], strides = [1, 1, 1]} : vector<2x12x240xf32> to vector<2x12x10xf32>
    %77 = arith.maximumf %75, %76 : vector<2x12x10xf32>
    %78 = vector.extract_strided_slice %50 {offsets = [0, 0, 180], sizes = [2, 12, 10], strides = [1, 1, 1]} : vector<2x12x240xf32> to vector<2x12x10xf32>
    %79 = vector.extract_strided_slice %50 {offsets = [0, 0, 190], sizes = [2, 12, 10], strides = [1, 1, 1]} : vector<2x12x240xf32> to vector<2x12x10xf32>
    %80 = arith.maximumf %78, %79 : vector<2x12x10xf32>
    %81 = vector.extract_strided_slice %50 {offsets = [0, 0, 200], sizes = [2, 12, 10], strides = [1, 1, 1]} : vector<2x12x240xf32> to vector<2x12x10xf32>
    %82 = vector.extract_strided_slice %50 {offsets = [0, 0, 210], sizes = [2, 12, 10], strides = [1, 1, 1]} : vector<2x12x240xf32> to vector<2x12x10xf32>
    %83 = arith.maximumf %81, %82 : vector<2x12x10xf32>
    %84 = vector.extract_strided_slice %50 {offsets = [0, 0, 220], sizes = [2, 12, 10], strides = [1, 1, 1]} : vector<2x12x240xf32> to vector<2x12x10xf32>
    %85 = vector.extract_strided_slice %50 {offsets = [0, 0, 230], sizes = [2, 12, 10], strides = [1, 1, 1]} : vector<2x12x240xf32> to vector<2x12x10xf32>
    %86 = arith.maximumf %84, %85 : vector<2x12x10xf32>
    %87 = tpu.concatenate %53, %56, %59, %62, %65, %68, %71, %74, %77, %80, %83, %86 in 2 : vector<2x12x10xf32>, vector<2x12x10xf32>, vector<2x12x10xf32>, vector<2x12x10xf32>, vector<2x12x10xf32>, vector<2x12x10xf32>, vector<2x12x10xf32>, vector<2x12x10xf32>, vector<2x12x10xf32>, vector<2x12x10xf32>, vector<2x12x10xf32>, vector<2x12x10xf32> -> vector<2x12x120xf32>
    %cst_6 = arith.constant 0.000000e+00 : f32
    %88 = vector.broadcast %cst_6 : f32 to vector<2x12x120xf32>
    %89 = arith.maximumf %87, %88 : vector<2x12x120xf32>
    %90 = vector.extract_strided_slice %89 {offsets = [0, 0, 0], sizes = [2, 8, 120], strides = [1, 1, 1]} : vector<2x12x120xf32> to vector<2x8x120xf32>
    %91 = vector.extract_strided_slice %89 {offsets = [0, 1, 0], sizes = [2, 8, 120], strides = [1, 1, 1]} : vector<2x12x120xf32> to vector<2x8x120xf32>
    %92 = vector.extract_strided_slice %89 {offsets = [0, 2, 0], sizes = [2, 8, 120], strides = [1, 1, 1]} : vector<2x12x120xf32> to vector<2x8x120xf32>
    %93 = vector.extract_strided_slice %89 {offsets = [0, 3, 0], sizes = [2, 8, 120], strides = [1, 1, 1]} : vector<2x12x120xf32> to vector<2x8x120xf32>
    %94 = vector.extract_strided_slice %89 {offsets = [0, 4, 0], sizes = [2, 8, 120], strides = [1, 1, 1]} : vector<2x12x120xf32> to vector<2x8x120xf32>
    %95 = tpu.concatenate %90, %91, %92, %93, %94 in 2 : vector<2x8x120xf32>, vector<2x8x120xf32>, vector<2x8x120xf32>, vector<2x8x120xf32>, vector<2x8x120xf32> -> vector<2x8x600xf32>
    %96 = vector.shape_cast %95 : vector<2x8x600xf32> to vector<16x600xf32>
    %c0_7 = arith.constant 0 : index
    %c0_8 = arith.constant 0 : index
    %97 = vector.load %arg3[%c0_7, %c0_8] : memref<600x160xf32, #tpu.memory_space<vmem>>, vector<600x160xf32>
    %cst_9 = arith.constant dense<0.000000e+00> : vector<16x160xf32>
    %98 = tpu.matmul %96, %97, %cst_9 {dimension_numbers = #tpu.dot_dimension_numbers<[1], [0], [0], [1], [0, 0, 1, 1], [], []>} : vector<16x600xf32>, vector<600x160xf32>, vector<16x160xf32> -> vector<16x160xf32>
    %c0_10 = arith.constant 0 : index
    %c0_11 = arith.constant 0 : index
    %99 = vector.load %arg4[%c0_10, %c0_11] : memref<1x160xf32, #tpu.memory_space<vmem>>, vector<1x160xf32>
    %100 = vector.broadcast %99 : vector<1x160xf32> to vector<16x160xf32>
    %101 = arith.addf %98, %100 : vector<16x160xf32>
    %102 = vector.extract_strided_slice %101 {offsets = [0, 0], sizes = [16, 20], strides = [1, 1]} : vector<16x160xf32> to vector<16x20xf32>
    %103 = vector.extract_strided_slice %101 {offsets = [0, 20], sizes = [16, 20], strides = [1, 1]} : vector<16x160xf32> to vector<16x20xf32>
    %104 = arith.addf %102, %103 : vector<16x20xf32>
    %105 = vector.extract_strided_slice %101 {offsets = [0, 40], sizes = [16, 20], strides = [1, 1]} : vector<16x160xf32> to vector<16x20xf32>
    %106 = arith.addf %104, %105 : vector<16x20xf32>
    %107 = vector.extract_strided_slice %101 {offsets = [0, 60], sizes = [16, 20], strides = [1, 1]} : vector<16x160xf32> to vector<16x20xf32>
    %108 = arith.addf %106, %107 : vector<16x20xf32>
    %109 = vector.extract_strided_slice %101 {offsets = [0, 80], sizes = [16, 20], strides = [1, 1]} : vector<16x160xf32> to vector<16x20xf32>
    %110 = arith.addf %108, %109 : vector<16x20xf32>
    %111 = vector.extract_strided_slice %101 {offsets = [0, 100], sizes = [16, 20], strides = [1, 1]} : vector<16x160xf32> to vector<16x20xf32>
    %112 = arith.addf %110, %111 : vector<16x20xf32>
    %113 = vector.extract_strided_slice %101 {offsets = [0, 120], sizes = [16, 20], strides = [1, 1]} : vector<16x160xf32> to vector<16x20xf32>
    %114 = arith.addf %112, %113 : vector<16x20xf32>
    %115 = vector.extract_strided_slice %101 {offsets = [0, 140], sizes = [16, 20], strides = [1, 1]} : vector<16x160xf32> to vector<16x20xf32>
    %116 = arith.addf %114, %115 : vector<16x20xf32>
    %cst_12 = arith.constant dense<0.000000e+00> : vector<20xf32>
    %117 = vector.multi_reduction <add>, %116, %cst_12 [0] : vector<16x20xf32> to vector<20xf32>
    %118 = vector.shape_cast %117 : vector<20xf32> to vector<1x20xf32>
    %cst_13 = arith.constant 7.812500e-03 : f32
    %119 = vector.broadcast %cst_13 : f32 to vector<1x20xf32>
    %120 = arith.mulf %118, %119 : vector<1x20xf32>
    %121 = tpu.concatenate %120, %120, %120, %120, %120, %120, %120, %120 in 1 : vector<1x20xf32>, vector<1x20xf32>, vector<1x20xf32>, vector<1x20xf32>, vector<1x20xf32>, vector<1x20xf32>, vector<1x20xf32>, vector<1x20xf32> -> vector<1x160xf32>
    %122 = vector.broadcast %121 : vector<1x160xf32> to vector<16x160xf32>
    %123 = arith.subf %101, %122 : vector<16x160xf32>
    %124 = arith.mulf %123, %123 : vector<16x160xf32>
    %125 = vector.extract_strided_slice %124 {offsets = [0, 0], sizes = [16, 20], strides = [1, 1]} : vector<16x160xf32> to vector<16x20xf32>
    %126 = vector.extract_strided_slice %124 {offsets = [0, 20], sizes = [16, 20], strides = [1, 1]} : vector<16x160xf32> to vector<16x20xf32>
    %127 = arith.addf %125, %126 : vector<16x20xf32>
    %128 = vector.extract_strided_slice %124 {offsets = [0, 40], sizes = [16, 20], strides = [1, 1]} : vector<16x160xf32> to vector<16x20xf32>
    %129 = arith.addf %127, %128 : vector<16x20xf32>
    %130 = vector.extract_strided_slice %124 {offsets = [0, 60], sizes = [16, 20], strides = [1, 1]} : vector<16x160xf32> to vector<16x20xf32>
    %131 = arith.addf %129, %130 : vector<16x20xf32>
    %132 = vector.extract_strided_slice %124 {offsets = [0, 80], sizes = [16, 20], strides = [1, 1]} : vector<16x160xf32> to vector<16x20xf32>
    %133 = arith.addf %131, %132 : vector<16x20xf32>
    %134 = vector.extract_strided_slice %124 {offsets = [0, 100], sizes = [16, 20], strides = [1, 1]} : vector<16x160xf32> to vector<16x20xf32>
    %135 = arith.addf %133, %134 : vector<16x20xf32>
    %136 = vector.extract_strided_slice %124 {offsets = [0, 120], sizes = [16, 20], strides = [1, 1]} : vector<16x160xf32> to vector<16x20xf32>
    %137 = arith.addf %135, %136 : vector<16x20xf32>
    %138 = vector.extract_strided_slice %124 {offsets = [0, 140], sizes = [16, 20], strides = [1, 1]} : vector<16x160xf32> to vector<16x20xf32>
    %139 = arith.addf %137, %138 : vector<16x20xf32>
    %cst_14 = arith.constant dense<0.000000e+00> : vector<20xf32>
    %140 = vector.multi_reduction <add>, %139, %cst_14 [0] : vector<16x20xf32> to vector<20xf32>
    %141 = vector.shape_cast %140 : vector<20xf32> to vector<1x20xf32>
    %cst_15 = arith.constant 7.812500e-03 : f32
    %142 = vector.broadcast %cst_15 : f32 to vector<1x20xf32>
    %143 = arith.mulf %141, %142 : vector<1x20xf32>
    %144 = tpu.concatenate %143, %143, %143, %143, %143, %143, %143, %143 in 1 : vector<1x20xf32>, vector<1x20xf32>, vector<1x20xf32>, vector<1x20xf32>, vector<1x20xf32>, vector<1x20xf32>, vector<1x20xf32>, vector<1x20xf32> -> vector<1x160xf32>
    %cst_16 = arith.constant 9.99999974E-6 : f32
    %145 = vector.broadcast %cst_16 : f32 to vector<1x160xf32>
    %146 = arith.addf %144, %145 : vector<1x160xf32>
    %147 = math.rsqrt %146 : vector<1x160xf32>
    %148 = vector.broadcast %147 : vector<1x160xf32> to vector<16x160xf32>
    %149 = arith.mulf %123, %148 : vector<16x160xf32>
    %c0_17 = arith.constant 0 : index
    %c0_18 = arith.constant 0 : index
    %150 = vector.load %arg5[%c0_17, %c0_18] : memref<1x160xf32, #tpu.memory_space<vmem>>, vector<1x160xf32>
    %151 = vector.broadcast %150 : vector<1x160xf32> to vector<16x160xf32>
    %152 = arith.mulf %149, %151 : vector<16x160xf32>
    %c0_19 = arith.constant 0 : index
    %c0_20 = arith.constant 0 : index
    %153 = vector.load %arg6[%c0_19, %c0_20] : memref<1x160xf32, #tpu.memory_space<vmem>>, vector<1x160xf32>
    %154 = vector.broadcast %153 : vector<1x160xf32> to vector<16x160xf32>
    %155 = arith.addf %152, %154 : vector<16x160xf32>
    %156 = vector.extract_strided_slice %155 {offsets = [0, 0], sizes = [1, 160], strides = [1, 1]} : vector<16x160xf32> to vector<1x160xf32>
    %157 = vector.extract_strided_slice %155 {offsets = [1, 0], sizes = [1, 160], strides = [1, 1]} : vector<16x160xf32> to vector<1x160xf32>
    %158 = arith.maximumf %156, %157 : vector<1x160xf32>
    %159 = vector.extract_strided_slice %155 {offsets = [2, 0], sizes = [1, 160], strides = [1, 1]} : vector<16x160xf32> to vector<1x160xf32>
    %160 = vector.extract_strided_slice %155 {offsets = [3, 0], sizes = [1, 160], strides = [1, 1]} : vector<16x160xf32> to vector<1x160xf32>
    %161 = arith.maximumf %159, %160 : vector<1x160xf32>
    %162 = vector.extract_strided_slice %155 {offsets = [4, 0], sizes = [1, 160], strides = [1, 1]} : vector<16x160xf32> to vector<1x160xf32>
    %163 = vector.extract_strided_slice %155 {offsets = [5, 0], sizes = [1, 160], strides = [1, 1]} : vector<16x160xf32> to vector<1x160xf32>
    %164 = arith.maximumf %162, %163 : vector<1x160xf32>
    %165 = vector.extract_strided_slice %155 {offsets = [6, 0], sizes = [1, 160], strides = [1, 1]} : vector<16x160xf32> to vector<1x160xf32>
    %166 = vector.extract_strided_slice %155 {offsets = [7, 0], sizes = [1, 160], strides = [1, 1]} : vector<16x160xf32> to vector<1x160xf32>
    %167 = arith.maximumf %165, %166 : vector<1x160xf32>
    %168 = vector.extract_strided_slice %155 {offsets = [8, 0], sizes = [1, 160], strides = [1, 1]} : vector<16x160xf32> to vector<1x160xf32>
    %169 = vector.extract_strided_slice %155 {offsets = [9, 0], sizes = [1, 160], strides = [1, 1]} : vector<16x160xf32> to vector<1x160xf32>
    %170 = arith.maximumf %168, %169 : vector<1x160xf32>
    %171 = vector.extract_strided_slice %155 {offsets = [10, 0], sizes = [1, 160], strides = [1, 1]} : vector<16x160xf32> to vector<1x160xf32>
    %172 = vector.extract_strided_slice %155 {offsets = [11, 0], sizes = [1, 160], strides = [1, 1]} : vector<16x160xf32> to vector<1x160xf32>
    %173 = arith.maximumf %171, %172 : vector<1x160xf32>
    %174 = vector.extract_strided_slice %155 {offsets = [12, 0], sizes = [1, 160], strides = [1, 1]} : vector<16x160xf32> to vector<1x160xf32>
    %175 = vector.extract_strided_slice %155 {offsets = [13, 0], sizes = [1, 160], strides = [1, 1]} : vector<16x160xf32> to vector<1x160xf32>
    %176 = arith.maximumf %174, %175 : vector<1x160xf32>
    %177 = vector.extract_strided_slice %155 {offsets = [14, 0], sizes = [1, 160], strides = [1, 1]} : vector<16x160xf32> to vector<1x160xf32>
    %178 = vector.extract_strided_slice %155 {offsets = [15, 0], sizes = [1, 160], strides = [1, 1]} : vector<16x160xf32> to vector<1x160xf32>
    %179 = arith.maximumf %177, %178 : vector<1x160xf32>
    %180 = tpu.concatenate %158, %161, %164, %167, %170, %173, %176, %179 in 0 : vector<1x160xf32>, vector<1x160xf32>, vector<1x160xf32>, vector<1x160xf32>, vector<1x160xf32>, vector<1x160xf32>, vector<1x160xf32>, vector<1x160xf32> -> vector<8x160xf32>
    %181 = vector.extract_strided_slice %180 {offsets = [0, 0], sizes = [8, 20], strides = [1, 1]} : vector<8x160xf32> to vector<8x20xf32>
    %182 = vector.extract_strided_slice %180 {offsets = [0, 20], sizes = [8, 20], strides = [1, 1]} : vector<8x160xf32> to vector<8x20xf32>
    %183 = arith.maximumf %181, %182 : vector<8x20xf32>
    %184 = vector.extract_strided_slice %180 {offsets = [0, 40], sizes = [8, 20], strides = [1, 1]} : vector<8x160xf32> to vector<8x20xf32>
    %185 = vector.extract_strided_slice %180 {offsets = [0, 60], sizes = [8, 20], strides = [1, 1]} : vector<8x160xf32> to vector<8x20xf32>
    %186 = arith.maximumf %184, %185 : vector<8x20xf32>
    %187 = vector.extract_strided_slice %180 {offsets = [0, 80], sizes = [8, 20], strides = [1, 1]} : vector<8x160xf32> to vector<8x20xf32>
    %188 = vector.extract_strided_slice %180 {offsets = [0, 100], sizes = [8, 20], strides = [1, 1]} : vector<8x160xf32> to vector<8x20xf32>
    %189 = arith.maximumf %187, %188 : vector<8x20xf32>
    %190 = vector.extract_strided_slice %180 {offsets = [0, 120], sizes = [8, 20], strides = [1, 1]} : vector<8x160xf32> to vector<8x20xf32>
    %191 = vector.extract_strided_slice %180 {offsets = [0, 140], sizes = [8, 20], strides = [1, 1]} : vector<8x160xf32> to vector<8x20xf32>
    %192 = arith.maximumf %190, %191 : vector<8x20xf32>
    %193 = tpu.concatenate %183, %186, %189, %192 in 1 : vector<8x20xf32>, vector<8x20xf32>, vector<8x20xf32>, vector<8x20xf32> -> vector<8x80xf32>
    %cst_21 = arith.constant 0.000000e+00 : f32
    %194 = vector.broadcast %cst_21 : f32 to vector<8x80xf32>
    %195 = arith.maximumf %193, %194 : vector<8x80xf32>
    %196 = vector.extract_strided_slice %195 {offsets = [0, 0], sizes = [1, 80], strides = [1, 1]} : vector<8x80xf32> to vector<1x80xf32>
    %197 = vector.extract_strided_slice %195 {offsets = [1, 0], sizes = [1, 80], strides = [1, 1]} : vector<8x80xf32> to vector<1x80xf32>
    %198 = vector.extract_strided_slice %195 {offsets = [2, 0], sizes = [1, 80], strides = [1, 1]} : vector<8x80xf32> to vector<1x80xf32>
    %199 = vector.extract_strided_slice %195 {offsets = [3, 0], sizes = [1, 80], strides = [1, 1]} : vector<8x80xf32> to vector<1x80xf32>
    %200 = tpu.concatenate %196, %197, %198, %199 in 1 : vector<1x80xf32>, vector<1x80xf32>, vector<1x80xf32>, vector<1x80xf32> -> vector<1x320xf32>
    %201 = vector.extract_strided_slice %195 {offsets = [4, 0], sizes = [1, 80], strides = [1, 1]} : vector<8x80xf32> to vector<1x80xf32>
    %202 = vector.extract_strided_slice %195 {offsets = [5, 0], sizes = [1, 80], strides = [1, 1]} : vector<8x80xf32> to vector<1x80xf32>
    %203 = vector.extract_strided_slice %195 {offsets = [6, 0], sizes = [1, 80], strides = [1, 1]} : vector<8x80xf32> to vector<1x80xf32>
    %204 = vector.extract_strided_slice %195 {offsets = [7, 0], sizes = [1, 80], strides = [1, 1]} : vector<8x80xf32> to vector<1x80xf32>
    %205 = tpu.concatenate %201, %202, %203, %204 in 1 : vector<1x80xf32>, vector<1x80xf32>, vector<1x80xf32>, vector<1x80xf32> -> vector<1x320xf32>
    %206 = tpu.concatenate %200, %205 in 0 : vector<1x320xf32>, vector<1x320xf32> -> vector<2x320xf32>
    %c0_22 = arith.constant 0 : index
    %c0_23 = arith.constant 0 : index
    %207 = vector.load %arg7[%c0_22, %c0_23] : memref<320x50xf32, #tpu.memory_space<vmem>>, vector<320x50xf32>
    %cst_24 = arith.constant dense<0.000000e+00> : vector<2x50xf32>
    %208 = tpu.matmul %206, %207, %cst_24 {dimension_numbers = #tpu.dot_dimension_numbers<[1], [0], [0], [1], [0, 0, 1, 1], [], []>} : vector<2x320xf32>, vector<320x50xf32>, vector<2x50xf32> -> vector<2x50xf32>
    %c0_25 = arith.constant 0 : index
    %c0_26 = arith.constant 0 : index
    %209 = vector.load %arg8[%c0_25, %c0_26] : memref<1x50xf32, #tpu.memory_space<vmem>>, vector<1x50xf32>
    %210 = vector.broadcast %209 : vector<1x50xf32> to vector<2x50xf32>
    %211 = arith.addf %208, %210 : vector<2x50xf32>
    %cst_27 = arith.constant dense<0.000000e+00> : vector<50xf32>
    %212 = vector.multi_reduction <add>, %211, %cst_27 [0] : vector<2x50xf32> to vector<50xf32>
    %213 = vector.shape_cast %212 : vector<50xf32> to vector<1x50xf32>
    %cst_28 = arith.constant 2.000000e+00 : f32
    %214 = vector.broadcast %cst_28 : f32 to vector<1x50xf32>
    %215 = arith.divf %213, %214 : vector<1x50xf32>
    %216 = vector.broadcast %215 : vector<1x50xf32> to vector<2x50xf32>
    %217 = arith.subf %211, %216 : vector<2x50xf32>
    %218 = vector.broadcast %215 : vector<1x50xf32> to vector<2x50xf32>
    %219 = arith.subf %211, %218 : vector<2x50xf32>
    %220 = arith.mulf %217, %219 : vector<2x50xf32>
    %cst_29 = arith.constant dense<0.000000e+00> : vector<50xf32>
    %221 = vector.multi_reduction <add>, %220, %cst_29 [0] : vector<2x50xf32> to vector<50xf32>
    %222 = vector.shape_cast %221 : vector<50xf32> to vector<1x50xf32>
    %cst_30 = arith.constant 2.000000e+00 : f32
    %223 = vector.broadcast %cst_30 : f32 to vector<1x50xf32>
    %224 = arith.divf %222, %223 : vector<1x50xf32>
    %225 = vector.broadcast %215 : vector<1x50xf32> to vector<2x50xf32>
    %226 = arith.subf %211, %225 : vector<2x50xf32>
    %cst_31 = arith.constant 9.99999974E-6 : f32
    %227 = vector.broadcast %cst_31 : f32 to vector<1x50xf32>
    %228 = arith.addf %224, %227 : vector<1x50xf32>
    %229 = math.rsqrt %228 : vector<1x50xf32>
    %230 = vector.broadcast %229 : vector<1x50xf32> to vector<2x50xf32>
    %231 = arith.mulf %226, %230 : vector<2x50xf32>
    %c0_32 = arith.constant 0 : index
    %c0_33 = arith.constant 0 : index
    %232 = vector.load %arg9[%c0_32, %c0_33] : memref<1x50xf32, #tpu.memory_space<vmem>>, vector<1x50xf32>
    %233 = vector.broadcast %232 : vector<1x50xf32> to vector<2x50xf32>
    %234 = arith.mulf %231, %233 : vector<2x50xf32>
    %c0_34 = arith.constant 0 : index
    %c0_35 = arith.constant 0 : index
    %235 = vector.load %arg10[%c0_34, %c0_35] : memref<1x50xf32, #tpu.memory_space<vmem>>, vector<1x50xf32>
    %236 = vector.broadcast %235 : vector<1x50xf32> to vector<2x50xf32>
    %237 = arith.addf %234, %236 : vector<2x50xf32>
    %cst_36 = arith.constant 0.000000e+00 : f32
    %238 = vector.broadcast %cst_36 : f32 to vector<2x50xf32>
    %239 = arith.maximumf %237, %238 : vector<2x50xf32>
    %c0_37 = arith.constant 0 : index
    %c0_38 = arith.constant 0 : index
    %240 = vector.load %arg11[%c0_37, %c0_38] : memref<50x10xf32, #tpu.memory_space<vmem>>, vector<50x10xf32>
    %cst_39 = arith.constant dense<0.000000e+00> : vector<2x10xf32>
    %241 = tpu.matmul %239, %240, %cst_39 {dimension_numbers = #tpu.dot_dimension_numbers<[1], [0], [0], [1], [0, 0, 1, 1], [], []>} : vector<2x50xf32>, vector<50x10xf32>, vector<2x10xf32> -> vector<2x10xf32>
    %c0_40 = arith.constant 0 : index
    %c0_41 = arith.constant 0 : index
    %242 = vector.load %arg12[%c0_40, %c0_41] : memref<1x10xf32, #tpu.memory_space<vmem>>, vector<1x10xf32>
    %243 = vector.broadcast %242 : vector<1x10xf32> to vector<2x10xf32>
    %244 = arith.addf %241, %243 : vector<2x10xf32>
    %cst_42 = arith.constant 0.000000e+00 : f32
    %245 = vector.broadcast %cst_42 : f32 to vector<2x10xf32>
    %246 = arith.maximumf %244, %245 : vector<2x10xf32>
    %cst_43 = arith.constant dense<0xFF800000> : vector<2xf32>
    %247 = vector.multi_reduction <maximumf>, %246, %cst_43 [1] : vector<2x10xf32> to vector<2xf32>
    %248 = vector.shape_cast %247 : vector<2xf32> to vector<2x1xf32>
    %249 = vector.broadcast %248 : vector<2x1xf32> to vector<2x10xf32>
    %250 = arith.subf %246, %249 : vector<2x10xf32>
    %251 = math.exp %250 : vector<2x10xf32>
    %cst_44 = arith.constant dense<0.000000e+00> : vector<2xf32>
    %252 = vector.multi_reduction <add>, %251, %cst_44 [1] : vector<2x10xf32> to vector<2xf32>
    %253 = vector.shape_cast %252 : vector<2xf32> to vector<2x1xf32>
    %254 = math.log %253 : vector<2x1xf32>
    %255 = arith.addf %248, %254 : vector<2x1xf32>
    %256 = vector.broadcast %255 : vector<2x1xf32> to vector<2x10xf32>
    %257 = arith.subf %246, %256 : vector<2x10xf32>
    %c0_45 = arith.constant 0 : index
    %c0_46 = arith.constant 0 : index
    %258 = vector.load %arg13[%c0_45, %c0_46] : memref<2x10xf32, #tpu.memory_space<vmem>>, vector<2x10xf32>
    tpu.vector_store %arg13[%c0_45, %c0_46], %257 {strides = array<i32>} : memref<2x10xf32, #tpu.memory_space<vmem>>, vector<2x10xf32>,
    return
  }
}

</mosaic_0001>

<llo_original>
// kernel: net_forward.1
$region0: #{net_forward.1}
  #allocation0 [shape = 'u32[]', space=smem, size = 0x4, offset = 0x4, fixed_abs, tag = 'smem constant byte address 0x4 - core index']
  #allocation1 [shape = 'u32[72,128]{1,0:T(1,128)}', space=vmem, size = 0x9000, scoped, tag = 'internal scratch']
  %s0 = inlined_call_operand.vmem [shape: f32[2,28,28], index: 0, kind: input, shape index: {}]
  %s1 = inlined_call_operand.vmem [shape: f32[140,240], index: 1, kind: input, shape index: {}]
  %s2 = inlined_call_operand.vmem [shape: f32[1,240], index: 2, kind: input, shape index: {}]
  %s3 = inlined_call_operand.vmem [shape: f32[600,160], index: 3, kind: input, shape index: {}]
  %s4 = inlined_call_operand.vmem [shape: f32[1,160], index: 4, kind: input, shape index: {}]
  %s5 = inlined_call_operand.vmem [shape: f32[1,160], index: 5, kind: input, shape index: {}]
  %s6 = inlined_call_operand.vmem [shape: f32[1,160], index: 6, kind: input, shape index: {}]
  %s7 = inlined_call_operand.vmem [shape: f32[320,50], index: 7, kind: input, shape index: {}]
  %s8 = inlined_call_operand.vmem [shape: f32[1,50], index: 8, kind: input, shape index: {}]
  %s9 = inlined_call_operand.vmem [shape: f32[1,50], index: 9, kind: input, shape index: {}]
  %s10 = inlined_call_operand.vmem [shape: f32[1,50], index: 10, kind: input, shape index: {}]
  %s11 = inlined_call_operand.vmem [shape: f32[50,10], index: 11, kind: input, shape index: {}]
  %s12 = inlined_call_operand.vmem [shape: f32[1,10], index: 12, kind: input, shape index: {}]
  %s13 = inlined_call_operand.hbm [shape: f32[2,10], index: 13, kind: output, shape index: {}]
  %s14 = sld [smem:[#allocation0]]
  $region62: #{net_forward.1} parent=0
    _
  %s16 = ssub.s32 1, %s14
  %s17 = scalar_select 0, %s16, %s14
  $region1: #{net_forward.1} parent=0
    #allocation2 [shape = 'u8[1024]{0}', space=vmem, size = 0x400, scoped, tag = 'output window, operand 0, single buffered']
    #allocation3 [shape = 's32[1]{0}', space=sflag, size = 0x4, scoped, tag = 'scoped memory for net_forward.1']
    %18 = vsyncpa [#allocation3], 0
    // Predicated region
    $region2: #{net_forward.1} parent=1 // pred_check
      _
    $region3: #{net_forward.1} parent=1 // pred_check_branch
      %20 = sbr.rel (0) target = $region5
    $region4: #{net_forward.1} parent=1 // pred_region
      _
    $region5: #{net_forward.1} parent=1 // pred_fallthru
      _
    // Predicated region
    $region6: #{net_forward.1} parent=1 // pred_check
      _
    $region7: #{net_forward.1} parent=1 // pred_check_branch
      %22 = sbr.rel (0) target = $region9
    $region8: #{net_forward.1} parent=1 // pred_region
      _
    $region9: #{net_forward.1} parent=1 // pred_fallthru
      _
    // Predicated region
    $region10: #{net_forward.1} parent=1 // pred_check
      _
    $region11: #{net_forward.1} parent=1 // pred_check_branch
      %24 = sbr.rel (0) target = $region13
    $region12: #{net_forward.1} parent=1 // pred_region
      _
    $region13: #{net_forward.1} parent=1 // pred_fallthru
      _
    // Predicated region
    $region14: #{net_forward.1} parent=1 // pred_check
      _
    $region15: #{net_forward.1} parent=1 // pred_check_branch
      %26 = sbr.rel (0) target = $region17
    $region16: #{net_forward.1} parent=1 // pred_region
      _
    $region17: #{net_forward.1} parent=1 // pred_fallthru
      _
    // Predicated region
    $region18: #{net_forward.1} parent=1 // pred_check
      _
    $region19: #{net_forward.1} parent=1 // pred_check_branch
      %28 = sbr.rel (0) target = $region21
    $region20: #{net_forward.1} parent=1 // pred_region
      _
    $region21: #{net_forward.1} parent=1 // pred_fallthru
      _
    // Predicated region
    $region22: #{net_forward.1} parent=1 // pred_check
      _
    $region23: #{net_forward.1} parent=1 // pred_check_branch
      %30 = sbr.rel (0) target = $region25
    $region24: #{net_forward.1} parent=1 // pred_region
      _
    $region25: #{net_forward.1} parent=1 // pred_fallthru
      _
    // Predicated region
    $region26: #{net_forward.1} parent=1 // pred_check
      _
    $region27: #{net_forward.1} parent=1 // pred_check_branch
      %32 = sbr.rel (0) target = $region29
    $region28: #{net_forward.1} parent=1 // pred_region
      _
    $region29: #{net_forward.1} parent=1 // pred_fallthru
      _
    // Predicated region
    $region30: #{net_forward.1} parent=1 // pred_check
      _
    $region31: #{net_forward.1} parent=1 // pred_check_branch
      %34 = sbr.rel (0) target = $region33
    $region32: #{net_forward.1} parent=1 // pred_region
      _
    $region33: #{net_forward.1} parent=1 // pred_fallthru
      _
    // Predicated region
    $region34: #{net_forward.1} parent=1 // pred_check
      _
    $region35: #{net_forward.1} parent=1 // pred_check_branch
      %36 = sbr.rel (0) target = $region37
    $region36: #{net_forward.1} parent=1 // pred_region
      _
    $region37: #{net_forward.1} parent=1 // pred_fallthru
      _
    // Predicated region
    $region38: #{net_forward.1} parent=1 // pred_check
      _
    $region39: #{net_forward.1} parent=1 // pred_check_branch
      %38 = sbr.rel (0) target = $region41
    $region40: #{net_forward.1} parent=1 // pred_region
      _
    $region41: #{net_forward.1} parent=1 // pred_fallthru
      _
    // Predicated region
    $region42: #{net_forward.1} parent=1 // pred_check
      _
    $region43: #{net_forward.1} parent=1 // pred_check_branch
      %40 = sbr.rel (0) target = $region45
    $region44: #{net_forward.1} parent=1 // pred_region
      _
    $region45: #{net_forward.1} parent=1 // pred_fallthru
      _
    // Predicated region
    $region46: #{net_forward.1} parent=1 // pred_check
      _
    $region47: #{net_forward.1} parent=1 // pred_check_branch
      %42 = sbr.rel (0) target = $region49
    $region48: #{net_forward.1} parent=1 // pred_region
      _
    $region49: #{net_forward.1} parent=1 // pred_fallthru
      _
    // Predicated region
    $region50: #{net_forward.1} parent=1 // pred_check
      _
    $region51: #{net_forward.1} parent=1 // pred_check_branch
      %44 = sbr.rel (0) target = $region53
    $region52: #{net_forward.1} parent=1 // pred_region
      _
    $region53: #{net_forward.1} parent=1 // pred_fallthru
      _
    %v45 = vld [vmem:[%s0] sm:$0xff]
    %v46 = vld [vmem:[%s0 + $0x8] sm:$0xff]
    %v47 = vld [vmem:[%s0 + $0x10] sm:$0xff]
    %v48 = vld [vmem:[%s0 + $0x18] sm:$0xf]
    %v49 = vld [vmem:[%s0 + $0x20] sm:$0xff]
    %v50 = vld [vmem:[%s0 + $0x28] sm:$0xff]
    %v51 = vld [vmem:[%s0 + $0x30] sm:$0xff]
    %v52 = vld [vmem:[%s0 + $0x38] sm:$0xf]
    %vm61 = vcmask 1046528
    %v62 = vrot.slane %v45, 1
    %v63 = vrot.slane %v46, 1
    %v64 = vsel %vm61, %v62, %v63
    %v65 = vrot.slane %v47, 1
    %v66 = vsel %vm61, %v63, %v65
    %v67 = vrot.slane %v48, 1
    %v68 = vsel %vm61, %v65, %v67
    %v69 = vrot.slane %v49, 1
    %v70 = vrot.slane %v50, 1
    %v71 = vsel %vm61, %v69, %v70
    %v72 = vrot.slane %v51, 1
    %v73 = vsel %vm61, %v70, %v72
    %v74 = vrot.slane %v52, 1
    %v75 = vsel %vm61, %v72, %v74
    %76 = vrot.lane.b32.xlu0 %v64, 28
    %v77 = vpop.permute.xlu0 %76
    %78 = vrot.lane.b32.xlu0 %v66, 28
    %v79 = vpop.permute.xlu0 %78
    %80 = vrot.lane.b32.xlu0 %v68, 28
    %v81 = vpop.permute.xlu0 %80
    %82 = vrot.lane.b32.xlu0 %v71, 28
    %v83 = vpop.permute.xlu0 %82
    %84 = vrot.lane.b32.xlu0 %v73, 28
    %v85 = vpop.permute.xlu0 %84
    %86 = vrot.lane.b32.xlu0 %v75, 28
    %v87 = vpop.permute.xlu0 %86
    %vm94 = vcmask 1045504
    %v95 = vrot.slane %v45, 2
    %v96 = vrot.slane %v46, 2
    %v97 = vsel %vm94, %v95, %v96
    %v98 = vrot.slane %v47, 2
    %v99 = vsel %vm94, %v96, %v98
    %v100 = vrot.slane %v48, 2
    %v101 = vsel %vm94, %v98, %v100
    %v102 = vrot.slane %v49, 2
    %v103 = vrot.slane %v50, 2
    %v104 = vsel %vm94, %v102, %v103
    %v105 = vrot.slane %v51, 2
    %v106 = vsel %vm94, %v103, %v105
    %v107 = vrot.slane %v52, 2
    %v108 = vsel %vm94, %v105, %v107
    %109 = vrot.lane.b32.xlu0 %v97, 56
    %v110 = vpop.permute.xlu0 %109
    %111 = vrot.lane.b32.xlu0 %v99, 56
    %v112 = vpop.permute.xlu0 %111
    %113 = vrot.lane.b32.xlu0 %v101, 56
    %v114 = vpop.permute.xlu0 %113
    %115 = vrot.lane.b32.xlu0 %v104, 56
    %v116 = vpop.permute.xlu0 %115
    %117 = vrot.lane.b32.xlu0 %v106, 56
    %v118 = vpop.permute.xlu0 %117
    %119 = vrot.lane.b32.xlu0 %v108, 56
    %v120 = vpop.permute.xlu0 %119
    %vm127 = vcmask 1044480
    %v128 = vrot.slane %v45, 3
    %v129 = vrot.slane %v46, 3
    %v130 = vsel %vm127, %v128, %v129
    %v131 = vrot.slane %v47, 3
    %v132 = vsel %vm127, %v129, %v131
    %v133 = vrot.slane %v48, 3
    %v134 = vsel %vm127, %v131, %v133
    %v135 = vrot.slane %v49, 3
    %v136 = vrot.slane %v50, 3
    %v137 = vsel %vm127, %v135, %v136
    %v138 = vrot.slane %v51, 3
    %v139 = vsel %vm127, %v136, %v138
    %v140 = vrot.slane %v52, 3
    %v141 = vsel %vm127, %v138, %v140
    %142 = vrot.lane.b32.xlu0 %v130, 84
    %v143 = vpop.permute.xlu0 %142
    %144 = vrot.lane.b32.xlu0 %v132, 84
    %v145 = vpop.permute.xlu0 %144
    %146 = vrot.lane.b32.xlu0 %v134, 84
    %v147 = vpop.permute.xlu0 %146
    %148 = vrot.lane.b32.xlu0 %v137, 84
    %v149 = vpop.permute.xlu0 %148
    %150 = vrot.lane.b32.xlu0 %v139, 84
    %v151 = vpop.permute.xlu0 %150
    %152 = vrot.lane.b32.xlu0 %v141, 84
    %v153 = vpop.permute.xlu0 %152
    %vm160 = vcmask 1043456
    %v161 = vrot.slane %v45, 4
    %v162 = vrot.slane %v46, 4
    %v163 = vsel %vm160, %v161, %v162
    %v164 = vrot.slane %v47, 4
    %v165 = vsel %vm160, %v162, %v164
    %v166 = vrot.slane %v48, 4
    %v167 = vsel %vm160, %v164, %v166
    %v168 = vrot.slane %v49, 4
    %v169 = vrot.slane %v50, 4
    %v170 = vsel %vm160, %v168, %v169
    %v171 = vrot.slane %v51, 4
    %v172 = vsel %vm160, %v169, %v171
    %v173 = vrot.slane %v52, 4
    %v174 = vsel %vm160, %v171, %v173
    %175 = vrot.lane.b32.xlu0 %v163, 112
    %v176 = vpop.permute.xlu0 %175
    %177 = vrot.lane.b32.xlu0 %v165, 112
    %v178 = vpop.permute.xlu0 %177
    %179 = vrot.lane.b32.xlu0 %v167, 112
    %v180 = vpop.permute.xlu0 %179
    %181 = vrot.lane.b32.xlu0 %v170, 112
    %v182 = vpop.permute.xlu0 %181
    %183 = vrot.lane.b32.xlu0 %v172, 112
    %v184 = vpop.permute.xlu0 %183
    %185 = vrot.lane.b32.xlu0 %v174, 112
    %v186 = vpop.permute.xlu0 %185
    %vm193 = vcmask 228352
    %v194 = vsel %vm193, %v45, %v77
    %v195 = vsel %vm193, %v46, %v79
    %v196 = vsel %vm193, %v47, %v81
    %v197 = vsel %vm193, %v49, %v83
    %v198 = vsel %vm193, %v50, %v85
    %v199 = vsel %vm193, %v51, %v87
    %vm200 = vcmask 457728
    %v201 = vsel %vm200, %v194, %v110
    %v202 = vsel %vm200, %v195, %v112
    %v203 = vsel %vm200, %v196, %v114
    %v204 = vsel %vm200, %v197, %v116
    %v205 = vsel %vm200, %v198, %v118
    %v206 = vsel %vm200, %v199, %v120
    %vm207 = vcmask 687104
    %v208 = vsel %vm207, %v201, %v143
    %v209 = vsel %vm207, %v202, %v145
    %v210 = vsel %vm207, %v203, %v147
    %v211 = vsel %vm207, %v204, %v149
    %v212 = vsel %vm207, %v205, %v151
    %v213 = vsel %vm207, %v206, %v153
    %vm214 = vcmask 916480
    %v215 = vsel %vm214, %v208, %v176
    %v216 = vsel %vm214, %v209, %v178
    %v217 = vsel %vm214, %v210, %v180
    %v218 = vsel %vm214, %v211, %v182
    %v219 = vsel %vm214, %v212, %v184
    %v220 = vsel %vm214, %v213, %v186
    %v221 = vld [vmem:[%s1] sm:$0xff]
    %v222 = vld [vmem:[%s1 + $0x8] sm:$0xff]
    %v223 = vld [vmem:[%s1 + $0x10] sm:$0xff]
    %v224 = vld [vmem:[%s1 + $0x18] sm:$0xff]
    %v225 = vld [vmem:[%s1 + $0x20] sm:$0xff]
    %v226 = vld [vmem:[%s1 + $0x28] sm:$0xff]
    %v227 = vld [vmem:[%s1 + $0x30] sm:$0xff]
    %v228 = vld [vmem:[%s1 + $0x38] sm:$0xff]
    %v229 = vld [vmem:[%s1 + $0x40] sm:$0xff]
    %v230 = vld [vmem:[%s1 + $0x48] sm:$0xff]
    %v231 = vld [vmem:[%s1 + $0x50] sm:$0xff]
    %v232 = vld [vmem:[%s1 + $0x58] sm:$0xff]
    %v233 = vld [vmem:[%s1 + $0x60] sm:$0xff]
    %v234 = vld [vmem:[%s1 + $0x68] sm:$0xff]
    %v235 = vld [vmem:[%s1 + $0x70] sm:$0xff]
    %v236 = vld [vmem:[%s1 + $0x78] sm:$0xff]
    %v237 = vld [vmem:[%s1 + $0x80] sm:$0xff]
    %v238 = vld [vmem:[%s1 + $0x88] sm:$0xff]
    %v239 = vld [vmem:[%s1 + $0x90] sm:$0xff]
    %v240 = vld [vmem:[%s1 + $0x98] sm:$0xff]
    %v241 = vld [vmem:[%s1 + $0xa0] sm:$0xff]
    %v242 = vld [vmem:[%s1 + $0xa8] sm:$0xff]
    %v243 = vld [vmem:[%s1 + $0xb0] sm:$0xff]
    %v244 = vld [vmem:[%s1 + $0xb8] sm:$0xff]
    %v245 = vld [vmem:[%s1 + $0xc0] sm:$0xff]
    %v246 = vld [vmem:[%s1 + $0xc8] sm:$0xff]
    %v247 = vld [vmem:[%s1 + $0xd0] sm:$0xff]
    %v248 = vld [vmem:[%s1 + $0xd8] sm:$0xff]
    %v249 = vld [vmem:[%s1 + $0xe0] sm:$0xff]
    %v250 = vld [vmem:[%s1 + $0xe8] sm:$0xff]
    %v251 = vld [vmem:[%s1 + $0xf0] sm:$0xff]
    %v252 = vld [vmem:[%s1 + $0xf8] sm:$0xff]
    %v253 = vld [vmem:[%s1 + $0x100] sm:$0xff]
    %v254 = vld [vmem:[%s1 + $0x108] sm:$0xff]
    %v255 = vld [vmem:[%s1 + $0x110] sm:$0xf]
    %v256 = vld [vmem:[%s1 + $0x118] sm:$0xf]
    %v257 = vld [vmem:[%s2] sm:$0x3]
    %v259 = vperm.slane %v257, 0
    %v260 = vperm.slane %v257, 1
    %vm263 = vcmask 97280
    %v264 = vsel %vm263, %v176, 0
    %v266 = vsel %vm263, %v178, 0
    %v268 = vsel %vm263, %v180, 0
    %v270 = vsel %vm263, %v182, 0
    %v272 = vsel %vm263, %v184, 0
    %v274 = vsel %vm263, %v186, 0
    %v277 = vsel %vm160, %v255, 0
    %v280 = vsel %vm160, %v256, 0
    %282 = vmatpush.msra.mxu0 %v251
    %283 = vmatpush.msra.mxu0 %v249
    %284 = vmatpush.msra.mxu0 %v247
    %285 = vmatpush.msra.mxu0 %v245
    %286 = vmatpush.msra.mxu0 %v243
    %287 = vmatpush.msra.mxu0 %v241
    %288 = vmatpush.msra.mxu0 %v239
    %289 = vmatpush.msra.mxu0 %v237
    %290 = vmatpush.msra.mxu0 %v235
    %291 = vmatpush.msra.mxu0 %v233
    %292 = vmatpush.msra.mxu0 %v231
    %293 = vmatpush.msra.mxu0 %v229
    %294 = vmatpush.msra.mxu0 %v227
    %295 = vmatpush.msra.mxu0 %v225
    %296 = vmatpush.msra.mxu0 %v223
    %297 = vmatpush.msra.mxu0 %v221
    %298 = vmatmul.f32.gmra.mxu0 %v215
    %v299 = vpop.f32.mrf.mxu0
    %v300 = vadd.f32 %v259, %v299
    %301 = vmatmul.f32.gmra.mxu0 %v216
    %v302 = vpop.f32.mrf.mxu0
    %v303 = vadd.f32 %v259, %v302
    %304 = vmatmul.f32.gmra.mxu0 %v217
    %v305 = vpop.f32.mrf.mxu0
    %v306 = vadd.f32 %v259, %v305
    %307 = vmatmul.f32.gmra.mxu0 %v218
    %v308 = vpop.f32.mrf.mxu0
    %v309 = vadd.f32 %v259, %v308
    %310 = vmatmul.f32.gmra.mxu0 %v219
    %v311 = vpop.f32.mrf.mxu0
    %v312 = vadd.f32 %v259, %v311
    %313 = vmatmul.f32.gmra.mxu0 %v220
    %v314 = vpop.f32.mrf.mxu0
    %v315 = vadd.f32 %v259, %v314
    %316 = vdwg.mxu0
    %317 = vmatpush.msra.mxu0 0.0
    %318 = vmatpush.msra.mxu0 0.0
    %319 = vmatpush.msra.mxu0 0.0
    %320 = vmatpush.msra.mxu0 0.0
    %321 = vmatpush.msra.mxu0 0.0
    %322 = vmatpush.msra.mxu0 0.0
    %323 = vmatpush.msra.mxu0 0.0
    %324 = vmatpush.msra.mxu0 0.0
    %325 = vmatpush.msra.mxu0 0.0
    %326 = vmatpush.msra.mxu0 0.0
    %327 = vmatpush.msra.mxu0 0.0
    %328 = vmatpush.msra.mxu0 0.0
    %329 = vmatpush.msra.mxu0 0.0
    %330 = vmatpush.msra.mxu0 0.0
    %331 = vmatpush.msra.mxu0 %v277
    %332 = vmatpush.msra.mxu0 %v253
    %333 = vmatmul.f32.gmra.mxu0 %v264
    %v334 = vpop.f32.mrf.mxu0
    %v335 = vadd.f32 %v300, %v334
    %336 = vmatmul.f32.gmra.mxu0 %v266
    %v337 = vpop.f32.mrf.mxu0
    %v338 = vadd.f32 %v303, %v337
    %339 = vmatmul.f32.gmra.mxu0 %v268
    %v340 = vpop.f32.mrf.mxu0
    %v341 = vadd.f32 %v306, %v340
    %342 = vmatmul.f32.gmra.mxu0 %v270
    %v343 = vpop.f32.mrf.mxu0
    %v344 = vadd.f32 %v309, %v343
    %345 = vmatmul.f32.gmra.mxu0 %v272
    %v346 = vpop.f32.mrf.mxu0
    %v347 = vadd.f32 %v312, %v346
    %348 = vmatmul.f32.gmra.mxu0 %v274
    %v349 = vpop.f32.mrf.mxu0
    %v350 = vadd.f32 %v315, %v349
    %351 = vdwg.mxu0
    %352 = vmatpush.msra.mxu0 %v252
    %353 = vmatpush.msra.mxu0 %v250
    %354 = vmatpush.msra.mxu0 %v248
    %355 = vmatpush.msra.mxu0 %v246
    %356 = vmatpush.msra.mxu0 %v244
    %357 = vmatpush.msra.mxu0 %v242
    %358 = vmatpush.msra.mxu0 %v240
    %359 = vmatpush.msra.mxu0 %v238
    %360 = vmatpush.msra.mxu0 %v236
    %361 = vmatpush.msra.mxu0 %v234
    %362 = vmatpush.msra.mxu0 %v232
    %363 = vmatpush.msra.mxu0 %v230
    %364 = vmatpush.msra.mxu0 %v228
    %365 = vmatpush.msra.mxu0 %v226
    %366 = vmatpush.msra.mxu0 %v224
    %367 = vmatpush.msra.mxu0 %v222
    %368 = vmatmul.f32.gmra.mxu0 %v215
    %v369 = vpop.f32.mrf.mxu0
    %v370 = vadd.f32 %v260, %v369
    %371 = vmatmul.f32.gmra.mxu0 %v216
    %v372 = vpop.f32.mrf.mxu0
    %v373 = vadd.f32 %v260, %v372
    %374 = vmatmul.f32.gmra.mxu0 %v217
    %v375 = vpop.f32.mrf.mxu0
    %v376 = vadd.f32 %v260, %v375
    %377 = vmatmul.f32.gmra.mxu0 %v218
    %v378 = vpop.f32.mrf.mxu0
    %v379 = vadd.f32 %v260, %v378
    %380 = vmatmul.f32.gmra.mxu0 %v219
    %v381 = vpop.f32.mrf.mxu0
    %v382 = vadd.f32 %v260, %v381
    %383 = vmatmul.f32.gmra.mxu0 %v220
    %v384 = vpop.f32.mrf.mxu0
    %v385 = vadd.f32 %v260, %v384
    %386 = vdwg.mxu0
    %387 = vmatpush.msra.mxu0 0.0
    %388 = vmatpush.msra.mxu0 0.0
    %389 = vmatpush.msra.mxu0 0.0
    %390 = vmatpush.msra.mxu0 0.0
    %391 = vmatpush.msra.mxu0 0.0
    %392 = vmatpush.msra.mxu0 0.0
    %393 = vmatpush.msra.mxu0 0.0
    %394 = vmatpush.msra.mxu0 0.0
    %395 = vmatpush.msra.mxu0 0.0
    %396 = vmatpush.msra.mxu0 0.0
    %397 = vmatpush.msra.mxu0 0.0
    %398 = vmatpush.msra.mxu0 0.0
    %399 = vmatpush.msra.mxu0 0.0
    %400 = vmatpush.msra.mxu0 0.0
    %401 = vmatpush.msra.mxu0 %v280
    %402 = vmatpush.msra.mxu0 %v254
    %403 = vmatmul.f32.gmra.mxu0 %v264
    %v404 = vpop.f32.mrf.mxu0
    %v405 = vadd.f32 %v370, %v404
    %406 = vmatmul.f32.gmra.mxu0 %v266
    %v407 = vpop.f32.mrf.mxu0
    %v408 = vadd.f32 %v373, %v407
    %409 = vmatmul.f32.gmra.mxu0 %v268
    %v410 = vpop.f32.mrf.mxu0
    %v411 = vadd.f32 %v376, %v410
    %412 = vmatmul.f32.gmra.mxu0 %v270
    %v413 = vpop.f32.mrf.mxu0
    %v414 = vadd.f32 %v379, %v413
    %415 = vmatmul.f32.gmra.mxu0 %v272
    %v416 = vpop.f32.mrf.mxu0
    %v417 = vadd.f32 %v382, %v416
    %418 = vmatmul.f32.gmra.mxu0 %v274
    %v419 = vpop.f32.mrf.mxu0
    %v420 = vadd.f32 %v385, %v419
    %421 = vdwg.mxu0
    %v426 = vrot.slane %v335, 1
    %v427 = vrot.slane %v405, 1
    %v428 = vrot.slane %v344, 1
    %v429 = vrot.slane %v414, 1
    %v434 = vmax.f32 %v335, %v426
    %v435 = vmax.f32 %v405, %v427
    %v436 = vmax.f32 %v344, %v428
    %v437 = vmax.f32 %v414, %v429
    %v442 = vrot.slane %v338, 1
    %v443 = vrot.slane %v408, 1
    %v444 = vrot.slane %v347, 1
    %v445 = vrot.slane %v417, 1
    %v450 = vmax.f32 %v338, %v442
    %v451 = vmax.f32 %v408, %v443
    %v452 = vmax.f32 %v347, %v444
    %v453 = vmax.f32 %v417, %v445
    %v458 = vrot.slane %v341, 1
    %v459 = vrot.slane %v411, 1
    %v460 = vrot.slane %v350, 1
    %v461 = vrot.slane %v420, 1
    %v466 = vmax.f32 %v341, %v458
    %v467 = vmax.f32 %v411, %v459
    %v468 = vmax.f32 %v350, %v460
    %v469 = vmax.f32 %v420, %v461
    %v474 = vrot.slane %v434, 1
    %v475 = vrot.slane %v435, 1
    %v476 = vrot.slane %v436, 1
    %v477 = vrot.slane %v437, 1
    %v482 = vrot.slane %v434, 2
    %v483 = vrot.slane %v435, 2
    %v484 = vrot.slane %v436, 2
    %v485 = vrot.slane %v437, 2
    %v490 = vrot.slane %v434, 3
    %v491 = vrot.slane %v435, 3
    %v492 = vrot.slane %v436, 3
    %v493 = vrot.slane %v437, 3
    %v502 = vrot.slane %v450, 4
    %v503 = vrot.slane %v451, 4
    %v504 = vrot.slane %v452, 4
    %v505 = vrot.slane %v453, 4
    %v510 = vrot.slane %v450, 5
    %v511 = vrot.slane %v451, 5
    %v512 = vrot.slane %v452, 5
    %v513 = vrot.slane %v453, 5
    %v518 = vrot.slane %v450, 6
    %v519 = vrot.slane %v451, 6
    %v520 = vrot.slane %v452, 6
    %v521 = vrot.slane %v453, 6
    %v526 = vrot.slane %v450, 7
    %v527 = vrot.slane %v451, 7
    %v528 = vrot.slane %v452, 7
    %v529 = vrot.slane %v453, 7
    %v538 = vrot.slane %v466, 1
    %v539 = vrot.slane %v467, 1
    %v540 = vrot.slane %v468, 1
    %v541 = vrot.slane %v469, 1
    %v546 = vrot.slane %v466, 2
    %v547 = vrot.slane %v467, 2
    %v548 = vrot.slane %v468, 2
    %v549 = vrot.slane %v469, 2
    %v554 = vrot.slane %v466, 3
    %v555 = vrot.slane %v467, 3
    %v556 = vrot.slane %v468, 3
    %v557 = vrot.slane %v469, 3
    %vm562 = vcmask 1040384
    %v563 = vsel %vm562, %v434, %v474
    %v564 = vsel %vm562, %v435, %v475
    %v565 = vsel %vm562, %v436, %v476
    %v566 = vsel %vm562, %v437, %v477
    %vm567 = vcmask 1041408
    %v568 = vsel %vm567, %v563, %v482
    %v569 = vsel %vm567, %v564, %v483
    %v570 = vsel %vm567, %v565, %v484
    %v571 = vsel %vm567, %v566, %v485
    %vm572 = vcmask 1042432
    %v573 = vsel %vm572, %v568, %v490
    %v574 = vsel %vm572, %v569, %v491
    %v575 = vsel %vm572, %v570, %v492
    %v576 = vsel %vm572, %v571, %v493
    %v577 = vsel %vm160, %v573, %v502
    %v578 = vsel %vm160, %v574, %v503
    %v579 = vsel %vm160, %v575, %v504
    %v580 = vsel %vm160, %v576, %v505
    %v581 = vsel %vm127, %v577, %v510
    %v582 = vsel %vm127, %v578, %v511
    %v583 = vsel %vm127, %v579, %v512
    %v584 = vsel %vm127, %v580, %v513
    %v585 = vsel %vm94, %v581, %v518
    %v586 = vsel %vm94, %v582, %v519
    %v587 = vsel %vm94, %v583, %v520
    %v588 = vsel %vm94, %v584, %v521
    %v589 = vsel %vm61, %v585, %v526
    %v590 = vsel %vm61, %v586, %v527
    %v591 = vsel %vm61, %v587, %v528
    %v592 = vsel %vm61, %v588, %v529
    %v593 = vsel %vm562, %v466, %v538
    %v594 = vsel %vm562, %v467, %v539
    %v595 = vsel %vm562, %v468, %v540
    %v596 = vsel %vm562, %v469, %v541
    %v597 = vsel %vm567, %v593, %v546
    %v598 = vsel %vm567, %v594, %v547
    %v599 = vsel %vm567, %v595, %v548
    %v600 = vsel %vm567, %v596, %v549
    %v601 = vsel %vm572, %v597, %v554
    %v602 = vsel %vm572, %v598, %v555
    %v603 = vsel %vm572, %v599, %v556
    %v604 = vsel %vm572, %v600, %v557
    %609 = vrot.lane.b32.xlu0 %v589, 118
    %v610 = vpop.permute.xlu0 %609
    %611 = vrot.lane.b32.xlu0 %v601, 118
    %v612 = vpop.permute.xlu0 %611
    %613 = vrot.lane.b32.xlu0 %v591, 118
    %v614 = vpop.permute.xlu0 %613
    %615 = vrot.lane.b32.xlu0 %v603, 118
    %v616 = vpop.permute.xlu0 %615
    %v621 = vmax.f32 %v589, %v610
    %v622 = vmax.f32 %v601, %v612
    %v623 = vmax.f32 %v591, %v614
    %v624 = vmax.f32 %v603, %v616
    %629 = vrot.lane.b32.xlu0 %v590, 118
    %v630 = vpop.permute.xlu0 %629
    %631 = vrot.lane.b32.xlu0 %v602, 118
    %v632 = vpop.permute.xlu0 %631
    %633 = vrot.lane.b32.xlu0 %v592, 118
    %v634 = vpop.permute.xlu0 %633
    %635 = vrot.lane.b32.xlu0 %v604, 118
    %v636 = vpop.permute.xlu0 %635
    %v641 = vmax.f32 %v589, %v630
    %v642 = vmax.f32 %v590, %v630
    %v643 = vmax.f32 %v601, %v632
    %v644 = vmax.f32 %v602, %v632
    %v645 = vmax.f32 %v591, %v634
    %v646 = vmax.f32 %v592, %v634
    %v647 = vmax.f32 %v603, %v636
    %v648 = vmax.f32 %v604, %v636
    %653 = vrot.lane.b32.xlu0 %v621, 118
    %v654 = vpop.permute.xlu0 %653
    %655 = vrot.lane.b32.xlu0 %v622, 118
    %v656 = vpop.permute.xlu0 %655
    %657 = vrot.lane.b32.xlu0 %v623, 118
    %v658 = vpop.permute.xlu0 %657
    %659 = vrot.lane.b32.xlu0 %v624, 118
    %v660 = vpop.permute.xlu0 %659
    %665 = vrot.lane.b32.xlu0 %v621, 108
    %v666 = vpop.permute.xlu0 %665
    %667 = vrot.lane.b32.xlu0 %v622, 108
    %v668 = vpop.permute.xlu0 %667
    %669 = vrot.lane.b32.xlu0 %v623, 108
    %v670 = vpop.permute.xlu0 %669
    %671 = vrot.lane.b32.xlu0 %v624, 108
    %v672 = vpop.permute.xlu0 %671
    %677 = vrot.lane.b32.xlu0 %v621, 98
    %v678 = vpop.permute.xlu0 %677
    %679 = vrot.lane.b32.xlu0 %v622, 98
    %v680 = vpop.permute.xlu0 %679
    %681 = vrot.lane.b32.xlu0 %v623, 98
    %v682 = vpop.permute.xlu0 %681
    %683 = vrot.lane.b32.xlu0 %v624, 98
    %v684 = vpop.permute.xlu0 %683
    %689 = vrot.lane.b32.xlu0 %v621, 88
    %v690 = vpop.permute.xlu0 %689
    %691 = vrot.lane.b32.xlu0 %v622, 88
    %v692 = vpop.permute.xlu0 %691
    %693 = vrot.lane.b32.xlu0 %v623, 88
    %v694 = vpop.permute.xlu0 %693
    %695 = vrot.lane.b32.xlu0 %v624, 88
    %v696 = vpop.permute.xlu0 %695
    %701 = vrot.lane.b32.xlu0 %v621, 78
    %v702 = vpop.permute.xlu0 %701
    %703 = vrot.lane.b32.xlu0 %v622, 78
    %v704 = vpop.permute.xlu0 %703
    %705 = vrot.lane.b32.xlu0 %v623, 78
    %v706 = vpop.permute.xlu0 %705
    %707 = vrot.lane.b32.xlu0 %v624, 78
    %v708 = vpop.permute.xlu0 %707
    %721 = vrot.lane.b32.xlu0 %v641, 68
    %v722 = vpop.permute.xlu0 %721
    %723 = vrot.lane.b32.xlu0 %v642, 68
    %v724 = vpop.permute.xlu0 %723
    %725 = vrot.lane.b32.xlu0 %v643, 68
    %v726 = vpop.permute.xlu0 %725
    %727 = vrot.lane.b32.xlu0 %v644, 68
    %v728 = vpop.permute.xlu0 %727
    %729 = vrot.lane.b32.xlu0 %v645, 68
    %v730 = vpop.permute.xlu0 %729
    %731 = vrot.lane.b32.xlu0 %v646, 68
    %v732 = vpop.permute.xlu0 %731
    %733 = vrot.lane.b32.xlu0 %v647, 68
    %v734 = vpop.permute.xlu0 %733
    %735 = vrot.lane.b32.xlu0 %v648, 68
    %v736 = vpop.permute.xlu0 %735
    %vm737 = vcmask 556032
    %v738 = vsel %vm737, %v722, %v724
    %v739 = vsel %vm737, %v726, %v728
    %v740 = vsel %vm737, %v730, %v732
    %v741 = vsel %vm737, %v734, %v736
    %746 = vrot.lane.b32.xlu0 %v642, 58
    %v747 = vpop.permute.xlu0 %746
    %748 = vrot.lane.b32.xlu0 %v644, 58
    %v749 = vpop.permute.xlu0 %748
    %750 = vrot.lane.b32.xlu0 %v646, 58
    %v751 = vpop.permute.xlu0 %750
    %752 = vrot.lane.b32.xlu0 %v648, 58
    %v753 = vpop.permute.xlu0 %752
    %758 = vrot.lane.b32.xlu0 %v642, 48
    %v759 = vpop.permute.xlu0 %758
    %760 = vrot.lane.b32.xlu0 %v644, 48
    %v761 = vpop.permute.xlu0 %760
    %762 = vrot.lane.b32.xlu0 %v646, 48
    %v763 = vpop.permute.xlu0 %762
    %764 = vrot.lane.b32.xlu0 %v648, 48
    %v765 = vpop.permute.xlu0 %764
    %770 = vrot.lane.b32.xlu0 %v642, 38
    %v771 = vpop.permute.xlu0 %770
    %772 = vrot.lane.b32.xlu0 %v644, 38
    %v773 = vpop.permute.xlu0 %772
    %774 = vrot.lane.b32.xlu0 %v646, 38
    %v775 = vpop.permute.xlu0 %774
    %776 = vrot.lane.b32.xlu0 %v648, 38
    %v777 = vpop.permute.xlu0 %776
    %782 = vrot.lane.b32.xlu0 %v642, 28
    %v783 = vpop.permute.xlu0 %782
    %784 = vrot.lane.b32.xlu0 %v644, 28
    %v785 = vpop.permute.xlu0 %784
    %786 = vrot.lane.b32.xlu0 %v646, 28
    %v787 = vpop.permute.xlu0 %786
    %788 = vrot.lane.b32.xlu0 %v648, 28
    %v789 = vpop.permute.xlu0 %788
    %794 = vrot.lane.b32.xlu0 %v642, 18
    %v795 = vpop.permute.xlu0 %794
    %796 = vrot.lane.b32.xlu0 %v644, 18
    %v797 = vpop.permute.xlu0 %796
    %798 = vrot.lane.b32.xlu0 %v646, 18
    %v799 = vpop.permute.xlu0 %798
    %800 = vrot.lane.b32.xlu0 %v648, 18
    %v801 = vpop.permute.xlu0 %800
    %vm806 = vcmask 80896
    %v807 = vsel %vm806, %v621, %v654
    %v808 = vsel %vm806, %v622, %v656
    %v809 = vsel %vm806, %v623, %v658
    %v810 = vsel %vm806, %v624, %v660
    %vm811 = vcmask 162816
    %v812 = vsel %vm811, %v807, %v666
    %v813 = vsel %vm811, %v808, %v668
    %v814 = vsel %vm811, %v809, %v670
    %v815 = vsel %vm811, %v810, %v672
    %vm816 = vcmask 244736
    %v817 = vsel %vm816, %v812, %v678
    %v818 = vsel %vm816, %v813, %v680
    %v819 = vsel %vm816, %v814, %v682
    %v820 = vsel %vm816, %v815, %v684
    %vm821 = vcmask 326656
    %v822 = vsel %vm821, %v817, %v690
    %v823 = vsel %vm821, %v818, %v692
    %v824 = vsel %vm821, %v819, %v694
    %v825 = vsel %vm821, %v820, %v696
    %vm826 = vcmask 408576
    %v827 = vsel %vm826, %v822, %v702
    %v828 = vsel %vm826, %v823, %v704
    %v829 = vsel %vm826, %v824, %v706
    %v830 = vsel %vm826, %v825, %v708
    %vm831 = vcmask 490496
    %v832 = vsel %vm831, %v827, %v738
    %v833 = vsel %vm831, %v828, %v739
    %v834 = vsel %vm831, %v829, %v740
    %v835 = vsel %vm831, %v830, %v741
    %vm836 = vcmask 572416
    %v837 = vsel %vm836, %v832, %v747
    %v838 = vsel %vm836, %v833, %v749
    %v839 = vsel %vm836, %v834, %v751
    %v840 = vsel %vm836, %v835, %v753
    %vm841 = vcmask 654336
    %v842 = vsel %vm841, %v837, %v759
    %v843 = vsel %vm841, %v838, %v761
    %v844 = vsel %vm841, %v839, %v763
    %v845 = vsel %vm841, %v840, %v765
    %vm846 = vcmask 736256
    %v847 = vsel %vm846, %v842, %v771
    %v848 = vsel %vm846, %v843, %v773
    %v849 = vsel %vm846, %v844, %v775
    %v850 = vsel %vm846, %v845, %v777
    %vm851 = vcmask 818176
    %v852 = vsel %vm851, %v847, %v783
    %v853 = vsel %vm851, %v848, %v785
    %v854 = vsel %vm851, %v849, %v787
    %v855 = vsel %vm851, %v850, %v789
    %vm856 = vcmask 900096
    %v857 = vsel %vm856, %v852, %v795
    %v858 = vsel %vm856, %v853, %v797
    %v859 = vsel %vm856, %v854, %v799
    %v860 = vsel %vm856, %v855, %v801
    %v861 = vmax.f32 %v857, 0.0
    %v862 = vmax.f32 %v858, 0.0
    %v863 = vmax.f32 %v859, 0.0
    %v864 = vmax.f32 %v860, 0.0
    %v869 = vrot.slane %v861, 1
    %v870 = vrot.slane %v862, 1
    %v871 = vsel %vm61, %v869, %v870
    %v872 = vrot.slane %v863, 1
    %v873 = vrot.slane %v864, 1
    %v874 = vsel %vm61, %v872, %v873
    %875 = vrot.lane.b32.xlu0 %v871, 120
    %v876 = vpop.permute.xlu0 %875
    %877 = vrot.lane.b32.xlu0 %v874, 120
    %v878 = vpop.permute.xlu0 %877
    %v881 = vrot.slane %v861, 2
    %v882 = vrot.slane %v862, 2
    %v883 = vsel %vm94, %v881, %v882
    %v884 = vrot.slane %v863, 2
    %v885 = vrot.slane %v864, 2
    %v886 = vsel %vm94, %v884, %v885
    %887 = vrot.lane.b32.xlu0 %v883, 112
    %v888 = vpop.permute.xlu0 %887
    %889 = vrot.lane.b32.xlu0 %v886, 112
    %v890 = vpop.permute.xlu0 %889
    %v893 = vrot.slane %v861, 3
    %v894 = vrot.slane %v862, 3
    %v895 = vsel %vm127, %v893, %v894
    %v896 = vrot.slane %v863, 3
    %v897 = vrot.slane %v864, 3
    %v898 = vsel %vm127, %v896, %v897
    %899 = vrot.lane.b32.xlu0 %v895, 104
    %v900 = vpop.permute.xlu0 %899
    %901 = vrot.lane.b32.xlu0 %v898, 104
    %v902 = vpop.permute.xlu0 %901
    %v905 = vrot.slane %v861, 4
    %v906 = vrot.slane %v862, 4
    %v907 = vsel %vm160, %v905, %v906
    %v908 = vrot.slane %v863, 4
    %v909 = vrot.slane %v864, 4
    %v910 = vsel %vm160, %v908, %v909
    %911 = vrot.lane.b32.xlu0 %v907, 96
    %v912 = vpop.permute.xlu0 %911
    %913 = vrot.lane.b32.xlu0 %v910, 96
    %v914 = vpop.permute.xlu0 %913
    %vm917 = vcmask 982016
    %v918 = vsel %vm917, %v861, %v876
    %v919 = vsel %vm917, %v863, %v878
    %v920 = vsel %vm214, %v876, %v888
    %v921 = vsel %vm214, %v878, %v890
    %vm922 = vcmask 850944
    %v923 = vsel %vm922, %v888, %v900
    %v924 = vsel %vm922, %v890, %v902
    %vm925 = vcmask 785408
    %v926 = vsel %vm925, %v900, %v912
    %v927 = vsel %vm925, %v902, %v914
    %v928 = vld [vmem:[%s3] sm:$0xff]
    %v929 = vld [vmem:[%s3 + $0x8] sm:$0xff]
    %v930 = vld [vmem:[%s3 + $0x10] sm:$0xff]
    %v931 = vld [vmem:[%s3 + $0x18] sm:$0xff]
    %v932 = vld [vmem:[%s3 + $0x20] sm:$0xff]
    %v933 = vld [vmem:[%s3 + $0x28] sm:$0xff]
    %v934 = vld [vmem:[%s3 + $0x30] sm:$0xff]
    %v935 = vld [vmem:[%s3 + $0x38] sm:$0xff]
    %v936 = vld [vmem:[%s3 + $0x40] sm:$0xff]
    %v937 = vld [vmem:[%s3 + $0x48] sm:$0xff]
    %v938 = vld [vmem:[%s3 + $0x50] sm:$0xff]
    %v939 = vld [vmem:[%s3 + $0x58] sm:$0xff]
    %v940 = vld [vmem:[%s3 + $0x60] sm:$0xff]
    %v941 = vld [vmem:[%s3 + $0x68] sm:$0xff]
    %v942 = vld [vmem:[%s3 + $0x70] sm:$0xff]
    %v943 = vld [vmem:[%s3 + $0x78] sm:$0xff]
    %v944 = vld [vmem:[%s3 + $0x80] sm:$0xff]
    %v945 = vld [vmem:[%s3 + $0x88] sm:$0xff]
    %v946 = vld [vmem:[%s3 + $0x90] sm:$0xff]
    %v947 = vld [vmem:[%s3 + $0x98] sm:$0xff]
    %v948 = vld [vmem:[%s3 + $0xa0] sm:$0xff]
    %v949 = vld [vmem:[%s3 + $0xa8] sm:$0xff]
    %v950 = vld [vmem:[%s3 + $0xb0] sm:$0xff]
    %v951 = vld [vmem:[%s3 + $0xb8] sm:$0xff]
    %v952 = vld [vmem:[%s3 + $0xc0] sm:$0xff]
    %v953 = vld [vmem:[%s3 + $0xc8] sm:$0xff]
    %v954 = vld [vmem:[%s3 + $0xd0] sm:$0xff]
    %v955 = vld [vmem:[%s3 + $0xd8] sm:$0xff]
    %v956 = vld [vmem:[%s3 + $0xe0] sm:$0xff]
    %v957 = vld [vmem:[%s3 + $0xe8] sm:$0xff]
    %v958 = vld [vmem:[%s3 + $0xf0] sm:$0xff]
    %v959 = vld [vmem:[%s3 + $0xf8] sm:$0xff]
    %v960 = vld [vmem:[%s3 + $0x100] sm:$0xff]
    %v961 = vld [vmem:[%s3 + $0x108] sm:$0xff]
    %v962 = vld [vmem:[%s3 + $0x110] sm:$0xff]
    %v963 = vld [vmem:[%s3 + $0x118] sm:$0xff]
    %v964 = vld [vmem:[%s3 + $0x120] sm:$0xff]
    %v965 = vld [vmem:[%s3 + $0x128] sm:$0xff]
    %v966 = vld [vmem:[%s3 + $0x130] sm:$0xff]
    %v967 = vld [vmem:[%s3 + $0x138] sm:$0xff]
    %v968 = vld [vmem:[%s3 + $0x140] sm:$0xff]
    %v969 = vld [vmem:[%s3 + $0x148] sm:$0xff]
    %v970 = vld [vmem:[%s3 + $0x150] sm:$0xff]
    %v971 = vld [vmem:[%s3 + $0x158] sm:$0xff]
    %v972 = vld [vmem:[%s3 + $0x160] sm:$0xff]
    %v973 = vld [vmem:[%s3 + $0x168] sm:$0xff]
    %v974 = vld [vmem:[%s3 + $0x170] sm:$0xff]
    %v975 = vld [vmem:[%s3 + $0x178] sm:$0xff]
    %v976 = vld [vmem:[%s3 + $0x180] sm:$0xff]
    %v977 = vld [vmem:[%s3 + $0x188] sm:$0xff]
    %v978 = vld [vmem:[%s3 + $0x190] sm:$0xff]
    %v979 = vld [vmem:[%s3 + $0x198] sm:$0xff]
    %v980 = vld [vmem:[%s3 + $0x1a0] sm:$0xff]
    %v981 = vld [vmem:[%s3 + $0x1a8] sm:$0xff]
    %v982 = vld [vmem:[%s3 + $0x1b0] sm:$0xff]
    %v983 = vld [vmem:[%s3 + $0x1b8] sm:$0xff]
    %v984 = vld [vmem:[%s3 + $0x1c0] sm:$0xff]
    %v985 = vld [vmem:[%s3 + $0x1c8] sm:$0xff]
    %v986 = vld [vmem:[%s3 + $0x1d0] sm:$0xff]
    %v987 = vld [vmem:[%s3 + $0x1d8] sm:$0xff]
    %v988 = vld [vmem:[%s3 + $0x1e0] sm:$0xff]
    %v989 = vld [vmem:[%s3 + $0x1e8] sm:$0xff]
    %v990 = vld [vmem:[%s3 + $0x1f0] sm:$0xff]
    %v991 = vld [vmem:[%s3 + $0x1f8] sm:$0xff]
    %v992 = vld [vmem:[%s3 + $0x200] sm:$0xff]
    %v993 = vld [vmem:[%s3 + $0x208] sm:$0xff]
    %v994 = vld [vmem:[%s3 + $0x210] sm:$0xff]
    %v995 = vld [vmem:[%s3 + $0x218] sm:$0xff]
    %v996 = vld [vmem:[%s3 + $0x220] sm:$0xff]
    %v997 = vld [vmem:[%s3 + $0x228] sm:$0xff]
    %v998 = vld [vmem:[%s3 + $0x230] sm:$0xff]
    %v999 = vld [vmem:[%s3 + $0x238] sm:$0xff]
    %v1000 = vld [vmem:[%s3 + $0x240] sm:$0xff]
    %v1001 = vld [vmem:[%s3 + $0x248] sm:$0xff]
    %v1002 = vld [vmem:[%s3 + $0x250] sm:$0xff]
    %v1003 = vld [vmem:[%s3 + $0x258] sm:$0xff]
    %v1004 = vld [vmem:[%s3 + $0x260] sm:$0xff]
    %v1005 = vld [vmem:[%s3 + $0x268] sm:$0xff]
    %v1006 = vld [vmem:[%s3 + $0x270] sm:$0xff]
    %v1007 = vld [vmem:[%s3 + $0x278] sm:$0xff]
    %v1008 = vld [vmem:[%s3 + $0x280] sm:$0xff]
    %v1009 = vld [vmem:[%s3 + $0x288] sm:$0xff]
    %v1010 = vld [vmem:[%s3 + $0x290] sm:$0xff]
    %v1011 = vld [vmem:[%s3 + $0x298] sm:$0xff]
    %v1012 = vld [vmem:[%s3 + $0x2a0] sm:$0xff]
    %v1013 = vld [vmem:[%s3 + $0x2a8] sm:$0xff]
    %v1014 = vld [vmem:[%s3 + $0x2b0] sm:$0xff]
    %v1015 = vld [vmem:[%s3 + $0x2b8] sm:$0xff]
    %v1016 = vld [vmem:[%s3 + $0x2c0] sm:$0xff]
    %v1017 = vld [vmem:[%s3 + $0x2c8] sm:$0xff]
    %v1018 = vld [vmem:[%s3 + $0x2d0] sm:$0xff]
    %v1019 = vld [vmem:[%s3 + $0x2d8] sm:$0xff]
    %v1020 = vld [vmem:[%s3 + $0x2e0] sm:$0xff]
    %v1021 = vld [vmem:[%s3 + $0x2e8] sm:$0xff]
    %v1022 = vld [vmem:[%s3 + $0x2f0] sm:$0xff]
    %v1023 = vld [vmem:[%s3 + $0x2f8] sm:$0xff]
    %v1024 = vld [vmem:[%s3 + $0x300] sm:$0xff]
    %v1025 = vld [vmem:[%s3 + $0x308] sm:$0xff]
    %v1026 = vld [vmem:[%s3 + $0x310] sm:$0xff]
    %v1027 = vld [vmem:[%s3 + $0x318] sm:$0xff]
    %v1028 = vld [vmem:[%s3 + $0x320] sm:$0xff]
    %v1029 = vld [vmem:[%s3 + $0x328] sm:$0xff]
    %v1030 = vld [vmem:[%s3 + $0x330] sm:$0xff]
    %v1031 = vld [vmem:[%s3 + $0x338] sm:$0xff]
    %v1032 = vld [vmem:[%s3 + $0x340] sm:$0xff]
    %v1033 = vld [vmem:[%s3 + $0x348] sm:$0xff]
    %v1034 = vld [vmem:[%s3 + $0x350] sm:$0xff]
    %v1035 = vld [vmem:[%s3 + $0x358] sm:$0xff]
    %v1036 = vld [vmem:[%s3 + $0x360] sm:$0xff]
    %v1037 = vld [vmem:[%s3 + $0x368] sm:$0xff]
    %v1038 = vld [vmem:[%s3 + $0x370] sm:$0xff]
    %v1039 = vld [vmem:[%s3 + $0x378] sm:$0xff]
    %v1040 = vld [vmem:[%s3 + $0x380] sm:$0xff]
    %v1041 = vld [vmem:[%s3 + $0x388] sm:$0xff]
    %v1042 = vld [vmem:[%s3 + $0x390] sm:$0xff]
    %v1043 = vld [vmem:[%s3 + $0x398] sm:$0xff]
    %v1044 = vld [vmem:[%s3 + $0x3a0] sm:$0xff]
    %v1045 = vld [vmem:[%s3 + $0x3a8] sm:$0xff]
    %v1046 = vld [vmem:[%s3 + $0x3b0] sm:$0xff]
    %v1047 = vld [vmem:[%s3 + $0x3b8] sm:$0xff]
    %v1048 = vld [vmem:[%s3 + $0x3c0] sm:$0xff]
    %v1049 = vld [vmem:[%s3 + $0x3c8] sm:$0xff]
    %v1050 = vld [vmem:[%s3 + $0x3d0] sm:$0xff]
    %v1051 = vld [vmem:[%s3 + $0x3d8] sm:$0xff]
    %v1052 = vld [vmem:[%s3 + $0x3e0] sm:$0xff]
    %v1053 = vld [vmem:[%s3 + $0x3e8] sm:$0xff]
    %v1054 = vld [vmem:[%s3 + $0x3f0] sm:$0xff]
    %v1055 = vld [vmem:[%s3 + $0x3f8] sm:$0xff]
    %v1056 = vld [vmem:[%s3 + $0x400] sm:$0xff]
    %v1057 = vld [vmem:[%s3 + $0x408] sm:$0xff]
    %v1058 = vld [vmem:[%s3 + $0x410] sm:$0xff]
    %v1059 = vld [vmem:[%s3 + $0x418] sm:$0xff]
    %v1060 = vld [vmem:[%s3 + $0x420] sm:$0xff]
    %v1061 = vld [vmem:[%s3 + $0x428] sm:$0xff]
    %v1062 = vld [vmem:[%s3 + $0x430] sm:$0xff]
    %v1063 = vld [vmem:[%s3 + $0x438] sm:$0xff]
    %v1064 = vld [vmem:[%s3 + $0x440] sm:$0xff]
    %v1065 = vld [vmem:[%s3 + $0x448] sm:$0xff]
    %v1066 = vld [vmem:[%s3 + $0x450] sm:$0xff]
    %v1067 = vld [vmem:[%s3 + $0x458] sm:$0xff]
    %v1068 = vld [vmem:[%s3 + $0x460] sm:$0xff]
    %v1069 = vld [vmem:[%s3 + $0x468] sm:$0xff]
    %v1070 = vld [vmem:[%s3 + $0x470] sm:$0xff]
    %v1071 = vld [vmem:[%s3 + $0x478] sm:$0xff]
    %v1072 = vld [vmem:[%s3 + $0x480] sm:$0xff]
    %v1073 = vld [vmem:[%s3 + $0x488] sm:$0xff]
    %v1074 = vld [vmem:[%s3 + $0x490] sm:$0xff]
    %v1075 = vld [vmem:[%s3 + $0x498] sm:$0xff]
    %v1076 = vld [vmem:[%s3 + $0x4a0] sm:$0xff]
    %v1077 = vld [vmem:[%s3 + $0x4a8] sm:$0xff]
    %v1078 = vld [vmem:[%s4] sm:$0x3]
    %v1080 = vperm.slane %v1078, 0
    %v1081 = vperm.slane %v1078, 1
    %vm1084 = vcmask 719872
    %v1085 = vsel %vm1084, %v912, 0
    %v1087 = vsel %vm1084, %v914, 0
    %1089 = vmatpush.msra.mxu0 %v958
    %1090 = vmatpush.msra.mxu0 %v956
    %1091 = vmatpush.msra.mxu0 %v954
    %1092 = vmatpush.msra.mxu0 %v952
    %1093 = vmatpush.msra.mxu0 %v950
    %1094 = vmatpush.msra.mxu0 %v948
    %1095 = vmatpush.msra.mxu0 %v946
    %1096 = vmatpush.msra.mxu0 %v944
    %1097 = vmatpush.msra.mxu0 %v942
    %1098 = vmatpush.msra.mxu0 %v940
    %1099 = vmatpush.msra.mxu0 %v938
    %1100 = vmatpush.msra.mxu0 %v936
    %1101 = vmatpush.msra.mxu0 %v934
    %1102 = vmatpush.msra.mxu0 %v932
    %1103 = vmatpush.msra.mxu0 %v930
    %1104 = vmatpush.msra.mxu0 %v928
    %1105 = vmatmul.f32.gmra.mxu0 %v918
    %v1106 = vpop.f32.mrf.mxu0
    %v1107 = vadd.f32 %v1080, %v1106
    %1108 = vmatmul.f32.gmra.mxu0 %v919
    %v1109 = vpop.f32.mrf.mxu0
    %v1110 = vadd.f32 %v1080, %v1109
    %1111 = vdwg.mxu0
    %1112 = vmatpush.msra.mxu0 %v990
    %1113 = vmatpush.msra.mxu0 %v988
    %1114 = vmatpush.msra.mxu0 %v986
    %1115 = vmatpush.msra.mxu0 %v984
    %1116 = vmatpush.msra.mxu0 %v982
    %1117 = vmatpush.msra.mxu0 %v980
    %1118 = vmatpush.msra.mxu0 %v978
    %1119 = vmatpush.msra.mxu0 %v976
    %1120 = vmatpush.msra.mxu0 %v974
    %1121 = vmatpush.msra.mxu0 %v972
    %1122 = vmatpush.msra.mxu0 %v970
    %1123 = vmatpush.msra.mxu0 %v968
    %1124 = vmatpush.msra.mxu0 %v966
    %1125 = vmatpush.msra.mxu0 %v964
    %1126 = vmatpush.msra.mxu0 %v962
    %1127 = vmatpush.msra.mxu0 %v960
    %1128 = vmatmul.f32.gmra.mxu0 %v920
    %v1129 = vpop.f32.mrf.mxu0
    %v1130 = vadd.f32 %v1107, %v1129
    %1131 = vmatmul.f32.gmra.mxu0 %v921
    %v1132 = vpop.f32.mrf.mxu0
    %v1133 = vadd.f32 %v1110, %v1132
    %1134 = vdwg.mxu0
    %1135 = vmatpush.msra.mxu0 %v1022
    %1136 = vmatpush.msra.mxu0 %v1020
    %1137 = vmatpush.msra.mxu0 %v1018
    %1138 = vmatpush.msra.mxu0 %v1016
    %1139 = vmatpush.msra.mxu0 %v1014
    %1140 = vmatpush.msra.mxu0 %v1012
    %1141 = vmatpush.msra.mxu0 %v1010
    %1142 = vmatpush.msra.mxu0 %v1008
    %1143 = vmatpush.msra.mxu0 %v1006
    %1144 = vmatpush.msra.mxu0 %v1004
    %1145 = vmatpush.msra.mxu0 %v1002
    %1146 = vmatpush.msra.mxu0 %v1000
    %1147 = vmatpush.msra.mxu0 %v998
    %1148 = vmatpush.msra.mxu0 %v996
    %1149 = vmatpush.msra.mxu0 %v994
    %1150 = vmatpush.msra.mxu0 %v992
    %1151 = vmatmul.f32.gmra.mxu0 %v923
    %v1152 = vpop.f32.mrf.mxu0
    %v1153 = vadd.f32 %v1130, %v1152
    %1154 = vmatmul.f32.gmra.mxu0 %v924
    %v1155 = vpop.f32.mrf.mxu0
    %v1156 = vadd.f32 %v1133, %v1155
    %1157 = vdwg.mxu0
    %1158 = vmatpush.msra.mxu0 %v1054
    %1159 = vmatpush.msra.mxu0 %v1052
    %1160 = vmatpush.msra.mxu0 %v1050
    %1161 = vmatpush.msra.mxu0 %v1048
    %1162 = vmatpush.msra.mxu0 %v1046
    %1163 = vmatpush.msra.mxu0 %v1044
    %1164 = vmatpush.msra.mxu0 %v1042
    %1165 = vmatpush.msra.mxu0 %v1040
    %1166 = vmatpush.msra.mxu0 %v1038
    %1167 = vmatpush.msra.mxu0 %v1036
    %1168 = vmatpush.msra.mxu0 %v1034
    %1169 = vmatpush.msra.mxu0 %v1032
    %1170 = vmatpush.msra.mxu0 %v1030
    %1171 = vmatpush.msra.mxu0 %v1028
    %1172 = vmatpush.msra.mxu0 %v1026
    %1173 = vmatpush.msra.mxu0 %v1024
    %1174 = vmatmul.f32.gmra.mxu0 %v926
    %v1175 = vpop.f32.mrf.mxu0
    %v1176 = vadd.f32 %v1153, %v1175
    %1177 = vmatmul.f32.gmra.mxu0 %v927
    %v1178 = vpop.f32.mrf.mxu0
    %v1179 = vadd.f32 %v1156, %v1178
    %1180 = vdwg.mxu0
    %1181 = vmatpush.msra.mxu0 0.0
    %1182 = vmatpush.msra.mxu0 0.0
    %1183 = vmatpush.msra.mxu0 0.0
    %1184 = vmatpush.msra.mxu0 0.0
    %1185 = vmatpush.msra.mxu0 0.0
    %1186 = vmatpush.msra.mxu0 %v1076
    %1187 = vmatpush.msra.mxu0 %v1074
    %1188 = vmatpush.msra.mxu0 %v1072
    %1189 = vmatpush.msra.mxu0 %v1070
    %1190 = vmatpush.msra.mxu0 %v1068
    %1191 = vmatpush.msra.mxu0 %v1066
    %1192 = vmatpush.msra.mxu0 %v1064
    %1193 = vmatpush.msra.mxu0 %v1062
    %1194 = vmatpush.msra.mxu0 %v1060
    %1195 = vmatpush.msra.mxu0 %v1058
    %1196 = vmatpush.msra.mxu0 %v1056
    %1197 = vmatmul.f32.gmra.mxu0 %v1085
    %v1198 = vpop.f32.mrf.mxu0
    %v1199 = vadd.f32 %v1176, %v1198
    %1200 = vmatmul.f32.gmra.mxu0 %v1087
    %v1201 = vpop.f32.mrf.mxu0
    %v1202 = vadd.f32 %v1179, %v1201
    %1203 = vdwg.mxu0
    %1204 = vmatpush.msra.mxu0 %v959
    %1205 = vmatpush.msra.mxu0 %v957
    %1206 = vmatpush.msra.mxu0 %v955
    %1207 = vmatpush.msra.mxu0 %v953
    %1208 = vmatpush.msra.mxu0 %v951
    %1209 = vmatpush.msra.mxu0 %v949
    %1210 = vmatpush.msra.mxu0 %v947
    %1211 = vmatpush.msra.mxu0 %v945
    %1212 = vmatpush.msra.mxu0 %v943
    %1213 = vmatpush.msra.mxu0 %v941
    %1214 = vmatpush.msra.mxu0 %v939
    %1215 = vmatpush.msra.mxu0 %v937
    %1216 = vmatpush.msra.mxu0 %v935
    %1217 = vmatpush.msra.mxu0 %v933
    %1218 = vmatpush.msra.mxu0 %v931
    %1219 = vmatpush.msra.mxu0 %v929
    %1220 = vmatmul.f32.gmra.mxu0 %v918
    %v1221 = vpop.f32.mrf.mxu0
    %v1222 = vadd.f32 %v1081, %v1221
    %1223 = vmatmul.f32.gmra.mxu0 %v919
    %v1224 = vpop.f32.mrf.mxu0
    %v1225 = vadd.f32 %v1081, %v1224
    %1226 = vdwg.mxu0
    %1227 = vmatpush.msra.mxu0 %v991
    %1228 = vmatpush.msra.mxu0 %v989
    %1229 = vmatpush.msra.mxu0 %v987
    %1230 = vmatpush.msra.mxu0 %v985
    %1231 = vmatpush.msra.mxu0 %v983
    %1232 = vmatpush.msra.mxu0 %v981
    %1233 = vmatpush.msra.mxu0 %v979
    %1234 = vmatpush.msra.mxu0 %v977
    %1235 = vmatpush.msra.mxu0 %v975
    %1236 = vmatpush.msra.mxu0 %v973
    %1237 = vmatpush.msra.mxu0 %v971
    %1238 = vmatpush.msra.mxu0 %v969
    %1239 = vmatpush.msra.mxu0 %v967
    %1240 = vmatpush.msra.mxu0 %v965
    %1241 = vmatpush.msra.mxu0 %v963
    %1242 = vmatpush.msra.mxu0 %v961
    %1243 = vmatmul.f32.gmra.mxu0 %v920
    %v1244 = vpop.f32.mrf.mxu0
    %v1245 = vadd.f32 %v1222, %v1244
    %1246 = vmatmul.f32.gmra.mxu0 %v921
    %v1247 = vpop.f32.mrf.mxu0
    %v1248 = vadd.f32 %v1225, %v1247
    %1249 = vdwg.mxu0
    %1250 = vmatpush.msra.mxu0 %v1023
    %1251 = vmatpush.msra.mxu0 %v1021
    %1252 = vmatpush.msra.mxu0 %v1019
    %1253 = vmatpush.msra.mxu0 %v1017
    %1254 = vmatpush.msra.mxu0 %v1015
    %1255 = vmatpush.msra.mxu0 %v1013
    %1256 = vmatpush.msra.mxu0 %v1011
    %1257 = vmatpush.msra.mxu0 %v1009
    %1258 = vmatpush.msra.mxu0 %v1007
    %1259 = vmatpush.msra.mxu0 %v1005
    %1260 = vmatpush.msra.mxu0 %v1003
    %1261 = vmatpush.msra.mxu0 %v1001
    %1262 = vmatpush.msra.mxu0 %v999
    %1263 = vmatpush.msra.mxu0 %v997
    %1264 = vmatpush.msra.mxu0 %v995
    %1265 = vmatpush.msra.mxu0 %v993
    %1266 = vmatmul.f32.gmra.mxu0 %v923
    %v1267 = vpop.f32.mrf.mxu0
    %v1268 = vadd.f32 %v1245, %v1267
    %1269 = vmatmul.f32.gmra.mxu0 %v924
    %v1270 = vpop.f32.mrf.mxu0
    %v1271 = vadd.f32 %v1248, %v1270
    %1272 = vdwg.mxu0
    %1273 = vmatpush.msra.mxu0 %v1055
    %1274 = vmatpush.msra.mxu0 %v1053
    %1275 = vmatpush.msra.mxu0 %v1051
    %1276 = vmatpush.msra.mxu0 %v1049
    %1277 = vmatpush.msra.mxu0 %v1047
    %1278 = vmatpush.msra.mxu0 %v1045
    %1279 = vmatpush.msra.mxu0 %v1043
    %1280 = vmatpush.msra.mxu0 %v1041
    %1281 = vmatpush.msra.mxu0 %v1039
    %1282 = vmatpush.msra.mxu0 %v1037
    %1283 = vmatpush.msra.mxu0 %v1035
    %1284 = vmatpush.msra.mxu0 %v1033
    %1285 = vmatpush.msra.mxu0 %v1031
    %1286 = vmatpush.msra.mxu0 %v1029
    %1287 = vmatpush.msra.mxu0 %v1027
    %1288 = vmatpush.msra.mxu0 %v1025
    %1289 = vmatmul.f32.gmra.mxu0 %v926
    %v1290 = vpop.f32.mrf.mxu0
    %v1291 = vadd.f32 %v1268, %v1290
    %1292 = vmatmul.f32.gmra.mxu0 %v927
    %v1293 = vpop.f32.mrf.mxu0
    %v1294 = vadd.f32 %v1271, %v1293
    %1295 = vdwg.mxu0
    %1296 = vmatpush.msra.mxu0 0.0
    %1297 = vmatpush.msra.mxu0 0.0
    %1298 = vmatpush.msra.mxu0 0.0
    %1299 = vmatpush.msra.mxu0 0.0
    %1300 = vmatpush.msra.mxu0 0.0
    %1301 = vmatpush.msra.mxu0 %v1077
    %1302 = vmatpush.msra.mxu0 %v1075
    %1303 = vmatpush.msra.mxu0 %v1073
    %1304 = vmatpush.msra.mxu0 %v1071
    %1305 = vmatpush.msra.mxu0 %v1069
    %1306 = vmatpush.msra.mxu0 %v1067
    %1307 = vmatpush.msra.mxu0 %v1065
    %1308 = vmatpush.msra.mxu0 %v1063
    %1309 = vmatpush.msra.mxu0 %v1061
    %1310 = vmatpush.msra.mxu0 %v1059
    %1311 = vmatpush.msra.mxu0 %v1057
    %1312 = vmatmul.f32.gmra.mxu0 %v1085
    %v1313 = vpop.f32.mrf.mxu0
    %v1314 = vadd.f32 %v1291, %v1313
    %1315 = vmatmul.f32.gmra.mxu0 %v1087
    %v1316 = vpop.f32.mrf.mxu0
    %v1317 = vadd.f32 %v1294, %v1316
    %1318 = vdwg.mxu0
    %1321 = vrot.lane.b32.xlu0 %v1199, 108
    %v1322 = vpop.permute.xlu0 %1321
    %1323 = vrot.lane.b32.xlu0 %v1202, 108
    %v1324 = vpop.permute.xlu0 %1323
    %v1327 = vadd.f32 %v1199, %v1322
    %v1328 = vadd.f32 %v1202, %v1324
    %1329 = vrot.lane.b32.xlu0 %v1199, 88
    %v1330 = vpop.permute.xlu0 %1329
    %1331 = vrot.lane.b32.xlu0 %v1202, 88
    %v1332 = vpop.permute.xlu0 %1331
    %v1335 = vadd.f32 %v1327, %v1330
    %v1336 = vadd.f32 %v1328, %v1332
    %1337 = vrot.lane.b32.xlu0 %v1199, 68
    %v1338 = vpop.permute.xlu0 %1337
    %1339 = vrot.lane.b32.xlu0 %v1202, 68
    %v1340 = vpop.permute.xlu0 %1339
    %v1343 = vadd.f32 %v1335, %v1338
    %v1344 = vadd.f32 %v1336, %v1340
    %1345 = vrot.lane.b32.xlu0 %v1199, 48
    %v1346 = vpop.permute.xlu0 %1345
    %1347 = vrot.lane.b32.xlu0 %v1202, 48
    %v1348 = vpop.permute.xlu0 %1347
    %v1351 = vadd.f32 %v1343, %v1346
    %v1352 = vadd.f32 %v1344, %v1348
    %1353 = vrot.lane.b32.xlu0 %v1199, 28
    %v1354 = vpop.permute.xlu0 %1353
    %1355 = vrot.lane.b32.xlu0 %v1202, 28
    %v1356 = vpop.permute.xlu0 %1355
    %v1359 = vadd.f32 %v1351, %v1354
    %v1360 = vadd.f32 %v1352, %v1356
    %1363 = vrot.lane.b32.xlu0 %v1199, 8
    %v1364 = vpop.permute.xlu0 %1363
    %1365 = vrot.lane.b32.xlu0 %v1314, 8
    %v1366 = vpop.permute.xlu0 %1365
    %1367 = vrot.lane.b32.xlu0 %v1202, 8
    %v1368 = vpop.permute.xlu0 %1367
    %1369 = vrot.lane.b32.xlu0 %v1317, 8
    %v1370 = vpop.permute.xlu0 %1369
    %vm1371 = vcmask 64512
    %v1372 = vsel %vm1371, %v1364, %v1366
    %v1373 = vsel %vm1371, %v1368, %v1370
    %v1376 = vadd.f32 %v1359, %v1372
    %v1377 = vadd.f32 %v1360, %v1373
    %1378 = vrot.lane.b32.xlu0 %v1314, 116
    %v1379 = vpop.permute.xlu0 %1378
    %1380 = vrot.lane.b32.xlu0 %v1317, 116
    %v1381 = vpop.permute.xlu0 %1380
    %v1384 = vadd.f32 %v1376, %v1379
    %v1385 = vadd.f32 %v1377, %v1381
    %v1386 = vsel %vm811, %v1384, 0.0
    %v1387 = vsel %vm811, %v1385, 0.0
    %v1388 = vadd.f32 %v1386, %v1387
    %v1389 = vrot.slane %v1388, 4
    %v1390 = vadd.f32 %v1388, %v1389
    %v1391 = vrot.slane %v1390, 2
    %v1392 = vadd.f32 %v1390, %v1391
    %v1393 = vrot.slane %v1392, 1
    %v1394 = vadd.f32 %v1392, %v1393
    %v1395 = vmul.f32 %v1394, 0.0078125
    %1397 = vrot.lane.b32.xlu0 %v1395, 20
    %v1398 = vpop.permute.xlu0 %1397
    %1400 = vrot.lane.b32.xlu0 %v1395, 40
    %v1401 = vpop.permute.xlu0 %1400
    %1403 = vrot.lane.b32.xlu0 %v1395, 60
    %v1404 = vpop.permute.xlu0 %1403
    %1406 = vrot.lane.b32.xlu0 %v1395, 80
    %v1407 = vpop.permute.xlu0 %1406
    %1409 = vrot.lane.b32.xlu0 %v1395, 100
    %v1410 = vpop.permute.xlu0 %1409
    %1412 = vrot.lane.b32.xlu0 %v1395, 120
    %v1413 = vpop.permute.xlu0 %1412
    %1415 = vrot.lane.b32.xlu0 %v1395, 12
    %v1416 = vpop.permute.xlu0 %1415
    %v1418 = vsel %vm811, %v1395, %v1398
    %v1419 = vsel %vm821, %v1418, %v1401
    %v1420 = vsel %vm831, %v1419, %v1404
    %v1421 = vsel %vm841, %v1420, %v1407
    %v1422 = vsel %vm851, %v1421, %v1410
    %v1423 = vsel %vm917, %v1422, %v1413
    %v1424 = vsel %vm263, %v1413, %v1416
    %v1425 = vperm.slane %v1423, 0
    %v1426 = vperm.slane %v1424, 0
    %v1427 = vsub.f32 %v1199, %v1425
    %v1428 = vsub.f32 %v1314, %v1426
    %v1429 = vsub.f32 %v1202, %v1425
    %v1430 = vsub.f32 %v1317, %v1426
    %v1431 = vmul.f32 %v1427, %v1427
    %v1432 = vmul.f32 %v1428, %v1428
    %v1433 = vmul.f32 %v1429, %v1429
    %v1434 = vmul.f32 %v1430, %v1430
    %1437 = vrot.lane.b32.xlu0 %v1431, 108
    %v1438 = vpop.permute.xlu0 %1437
    %1439 = vrot.lane.b32.xlu0 %v1433, 108
    %v1440 = vpop.permute.xlu0 %1439
    %v1443 = vadd.f32 %v1431, %v1438
    %v1444 = vadd.f32 %v1433, %v1440
    %1445 = vrot.lane.b32.xlu0 %v1431, 88
    %v1446 = vpop.permute.xlu0 %1445
    %1447 = vrot.lane.b32.xlu0 %v1433, 88
    %v1448 = vpop.permute.xlu0 %1447
    %v1451 = vadd.f32 %v1443, %v1446
    %v1452 = vadd.f32 %v1444, %v1448
    %1453 = vrot.lane.b32.xlu0 %v1431, 68
    %v1454 = vpop.permute.xlu0 %1453
    %1455 = vrot.lane.b32.xlu0 %v1433, 68
    %v1456 = vpop.permute.xlu0 %1455
    %v1459 = vadd.f32 %v1451, %v1454
    %v1460 = vadd.f32 %v1452, %v1456
    %1461 = vrot.lane.b32.xlu0 %v1431, 48
    %v1462 = vpop.permute.xlu0 %1461
    %1463 = vrot.lane.b32.xlu0 %v1433, 48
    %v1464 = vpop.permute.xlu0 %1463
    %v1467 = vadd.f32 %v1459, %v1462
    %v1468 = vadd.f32 %v1460, %v1464
    %1469 = vrot.lane.b32.xlu0 %v1431, 28
    %v1470 = vpop.permute.xlu0 %1469
    %1471 = vrot.lane.b32.xlu0 %v1433, 28
    %v1472 = vpop.permute.xlu0 %1471
    %v1475 = vadd.f32 %v1467, %v1470
    %v1476 = vadd.f32 %v1468, %v1472
    %1479 = vrot.lane.b32.xlu0 %v1431, 8
    %v1480 = vpop.permute.xlu0 %1479
    %1481 = vrot.lane.b32.xlu0 %v1432, 8
    %v1482 = vpop.permute.xlu0 %1481
    %1483 = vrot.lane.b32.xlu0 %v1433, 8
    %v1484 = vpop.permute.xlu0 %1483
    %1485 = vrot.lane.b32.xlu0 %v1434, 8
    %v1486 = vpop.permute.xlu0 %1485
    %v1487 = vsel %vm1371, %v1480, %v1482
    %v1488 = vsel %vm1371, %v1484, %v1486
    %v1491 = vadd.f32 %v1475, %v1487
    %v1492 = vadd.f32 %v1476, %v1488
    %1493 = vrot.lane.b32.xlu0 %v1432, 116
    %v1494 = vpop.permute.xlu0 %1493
    %1495 = vrot.lane.b32.xlu0 %v1434, 116
    %v1496 = vpop.permute.xlu0 %1495
    %v1499 = vadd.f32 %v1491, %v1494
    %v1500 = vadd.f32 %v1492, %v1496
    %v1501 = vsel %vm811, %v1499, 0.0
    %v1502 = vsel %vm811, %v1500, 0.0
    %v1503 = vadd.f32 %v1501, %v1502
    %v1504 = vrot.slane %v1503, 4
    %v1505 = vadd.f32 %v1503, %v1504
    %v1506 = vrot.slane %v1505, 2
    %v1507 = vadd.f32 %v1505, %v1506
    %v1508 = vrot.slane %v1507, 1
    %v1509 = vadd.f32 %v1507, %v1508
    %v1510 = vmul.f32 %v1509, 0.0078125
    %1512 = vrot.lane.b32.xlu0 %v1510, 20
    %v1513 = vpop.permute.xlu0 %1512
    %1515 = vrot.lane.b32.xlu0 %v1510, 40
    %v1516 = vpop.permute.xlu0 %1515
    %1518 = vrot.lane.b32.xlu0 %v1510, 60
    %v1519 = vpop.permute.xlu0 %1518
    %1521 = vrot.lane.b32.xlu0 %v1510, 80
    %v1522 = vpop.permute.xlu0 %1521
    %1524 = vrot.lane.b32.xlu0 %v1510, 100
    %v1525 = vpop.permute.xlu0 %1524
    %1527 = vrot.lane.b32.xlu0 %v1510, 120
    %v1528 = vpop.permute.xlu0 %1527
    %1530 = vrot.lane.b32.xlu0 %v1510, 12
    %v1531 = vpop.permute.xlu0 %1530
    %v1533 = vsel %vm811, %v1510, %v1513
    %v1534 = vsel %vm821, %v1533, %v1516
    %v1535 = vsel %vm831, %v1534, %v1519
    %v1536 = vsel %vm841, %v1535, %v1522
    %v1537 = vsel %vm851, %v1536, %v1525
    %v1538 = vsel %vm917, %v1537, %v1528
    %v1539 = vsel %vm263, %v1528, %v1531
    %v1540 = vadd.f32 %v1538, 1e-05
    %v1541 = vadd.f32 %v1539, 1e-05
    %v1542 = vrsqrt.pop %v1540
    %v1543 = vmul.f32 %v1542, %v1540
    %v1544 = vmul.f32 %v1543, %v1542
    %v1545 = vmul.f32 0.5, %v1544
    %v1546 = vsub.f32 1.5, %v1545
    %v1547 = vmul.f32 %v1542, %v1546
    %vm1548 = vweird.f32 %v1540
    %vm1549 = vweird.f32 %v1542
    %vm1550 = vmor %vm1548, %vm1549
    %v1551 = vsel %vm1550, %v1542, %v1547
    %v1552 = vrsqrt.pop %v1541
    %v1553 = vmul.f32 %v1552, %v1541
    %v1554 = vmul.f32 %v1553, %v1552
    %v1555 = vmul.f32 0.5, %v1554
    %v1556 = vsub.f32 1.5, %v1555
    %v1557 = vmul.f32 %v1552, %v1556
    %vm1558 = vweird.f32 %v1541
    %vm1559 = vweird.f32 %v1552
    %vm1560 = vmor %vm1558, %vm1559
    %v1561 = vsel %vm1560, %v1552, %v1557
    %v1562 = vperm.slane %v1551, 0
    %v1563 = vperm.slane %v1561, 0
    %v1564 = vmul.f32 %v1427, %v1562
    %v1565 = vmul.f32 %v1428, %v1563
    %v1566 = vmul.f32 %v1429, %v1562
    %v1567 = vmul.f32 %v1430, %v1563
    %v1568 = vld [vmem:[%s5] sm:$0x3]
    %v1570 = vperm.slane %v1568, 0
    %v1571 = vperm.slane %v1568, 1
    %v1574 = vmul.f32 %v1564, %v1570
    %v1575 = vmul.f32 %v1565, %v1571
    %v1576 = vmul.f32 %v1566, %v1570
    %v1577 = vmul.f32 %v1567, %v1571
    %v1578 = vld [vmem:[%s6] sm:$0x3]
    %v1580 = vperm.slane %v1578, 0
    %v1581 = vperm.slane %v1578, 1
    %v1584 = vadd.f32 %v1574, %v1580
    %v1585 = vadd.f32 %v1575, %v1581
    %v1586 = vadd.f32 %v1576, %v1580
    %v1587 = vadd.f32 %v1577, %v1581
    %v1590 = vrot.slane %v1584, 1
    %v1591 = vrot.slane %v1585, 1
    %v1594 = vmax.f32 %v1584, %v1590
    %v1595 = vmax.f32 %v1585, %v1591
    %v1598 = vrot.slane %v1586, 1
    %v1599 = vrot.slane %v1587, 1
    %v1602 = vmax.f32 %v1586, %v1598
    %v1603 = vmax.f32 %v1587, %v1599
    %v1606 = vrot.slane %v1594, 1
    %v1607 = vrot.slane %v1595, 1
    %v1610 = vrot.slane %v1594, 2
    %v1611 = vrot.slane %v1595, 2
    %v1614 = vrot.slane %v1594, 3
    %v1615 = vrot.slane %v1595, 3
    %v1620 = vrot.slane %v1602, 4
    %v1621 = vrot.slane %v1603, 4
    %v1624 = vrot.slane %v1602, 5
    %v1625 = vrot.slane %v1603, 5
    %v1628 = vrot.slane %v1602, 6
    %v1629 = vrot.slane %v1603, 6
    %v1632 = vrot.slane %v1602, 7
    %v1633 = vrot.slane %v1603, 7
    %v1636 = vsel %vm562, %v1594, %v1606
    %v1637 = vsel %vm562, %v1595, %v1607
    %v1638 = vsel %vm567, %v1636, %v1610
    %v1639 = vsel %vm567, %v1637, %v1611
    %v1640 = vsel %vm572, %v1638, %v1614
    %v1641 = vsel %vm572, %v1639, %v1615
    %v1642 = vsel %vm160, %v1640, %v1620
    %v1643 = vsel %vm160, %v1641, %v1621
    %v1644 = vsel %vm127, %v1642, %v1624
    %v1645 = vsel %vm127, %v1643, %v1625
    %v1646 = vsel %vm94, %v1644, %v1628
    %v1647 = vsel %vm94, %v1645, %v1629
    %v1648 = vsel %vm61, %v1646, %v1632
    %v1649 = vsel %vm61, %v1647, %v1633
    %1651 = vrot.lane.b32.xlu0 %v1648, 108
    %v1652 = vpop.permute.xlu0 %1651
    %v1654 = vmax.f32 %v1648, %v1652
    %1656 = vrot.lane.b32.xlu0 %v1649, 108
    %v1657 = vpop.permute.xlu0 %1656
    %v1659 = vmax.f32 %v1648, %v1657
    %v1660 = vmax.f32 %v1649, %v1657
    %1662 = vrot.lane.b32.xlu0 %v1654, 108
    %v1663 = vpop.permute.xlu0 %1662
    %1665 = vrot.lane.b32.xlu0 %v1654, 88
    %v1666 = vpop.permute.xlu0 %1665
    %1670 = vrot.lane.b32.xlu0 %v1659, 68
    %v1671 = vpop.permute.xlu0 %1670
    %1672 = vrot.lane.b32.xlu0 %v1660, 68
    %v1673 = vpop.permute.xlu0 %1672
    %v1674 = vsel %vm737, %v1671, %v1673
    %v1676 = vsel %vm811, %v1654, %v1663
    %v1677 = vsel %vm821, %v1676, %v1666
    %v1678 = vsel %vm831, %v1677, %v1674
    %v1679 = vmax.f32 %v1678, 0.0
    %v1681 = vrot.slane %v1679, 1
    %1682 = vrot.lane.b32.xlu0 %v1681, 80
    %v1683 = vpop.permute.xlu0 %1682
    %v1685 = vrot.slane %v1679, 2
    %1686 = vrot.lane.b32.xlu0 %v1685, 32
    %v1687 = vpop.permute.xlu0 %1686
    %v1689 = vrot.slane %v1679, 3
    %1690 = vrot.lane.b32.xlu0 %v1689, 112
    %v1691 = vpop.permute.xlu0 %1690
    %v1693 = vsel %vm841, %v1679, %v1683
    %vm1694 = vcmask 261120
    %v1695 = vsel %vm1694, %v1683, %v1687
    %v1696 = vsel %vm214, %v1695, %v1691
    %v1699 = vrot.slane %v1693, 3
    %v1700 = vrot.slane %v1696, 3
    %v1701 = vrot.slane %v1691, 3
    %v1705 = vsel %vm562, %v1693, %v1699
    %v1706 = vsel %vm562, %v1696, %v1700
    %v1707 = vsel %vm562, %v1691, %v1701
    %v1708 = vld [vmem:[%s7] sm:$0xff]
    %v1709 = vld [vmem:[%s7 + $0x8] sm:$0xff]
    %v1710 = vld [vmem:[%s7 + $0x10] sm:$0xff]
    %v1711 = vld [vmem:[%s7 + $0x18] sm:$0xff]
    %v1712 = vld [vmem:[%s7 + $0x20] sm:$0xff]
    %v1713 = vld [vmem:[%s7 + $0x28] sm:$0xff]
    %v1714 = vld [vmem:[%s7 + $0x30] sm:$0xff]
    %v1715 = vld [vmem:[%s7 + $0x38] sm:$0xff]
    %v1716 = vld [vmem:[%s7 + $0x40] sm:$0xff]
    %v1717 = vld [vmem:[%s7 + $0x48] sm:$0xff]
    %v1718 = vld [vmem:[%s7 + $0x50] sm:$0xff]
    %v1719 = vld [vmem:[%s7 + $0x58] sm:$0xff]
    %v1720 = vld [vmem:[%s7 + $0x60] sm:$0xff]
    %v1721 = vld [vmem:[%s7 + $0x68] sm:$0xff]
    %v1722 = vld [vmem:[%s7 + $0x70] sm:$0xff]
    %v1723 = vld [vmem:[%s7 + $0x78] sm:$0xff]
    %v1724 = vld [vmem:[%s7 + $0x80] sm:$0xff]
    %v1725 = vld [vmem:[%s7 + $0x88] sm:$0xff]
    %v1726 = vld [vmem:[%s7 + $0x90] sm:$0xff]
    %v1727 = vld [vmem:[%s7 + $0x98] sm:$0xff]
    %v1728 = vld [vmem:[%s7 + $0xa0] sm:$0xff]
    %v1729 = vld [vmem:[%s7 + $0xa8] sm:$0xff]
    %v1730 = vld [vmem:[%s7 + $0xb0] sm:$0xff]
    %v1731 = vld [vmem:[%s7 + $0xb8] sm:$0xff]
    %v1732 = vld [vmem:[%s7 + $0xc0] sm:$0xff]
    %v1733 = vld [vmem:[%s7 + $0xc8] sm:$0xff]
    %v1734 = vld [vmem:[%s7 + $0xd0] sm:$0xff]
    %v1735 = vld [vmem:[%s7 + $0xd8] sm:$0xff]
    %v1736 = vld [vmem:[%s7 + $0xe0] sm:$0xff]
    %v1737 = vld [vmem:[%s7 + $0xe8] sm:$0xff]
    %v1738 = vld [vmem:[%s7 + $0xf0] sm:$0xff]
    %v1739 = vld [vmem:[%s7 + $0xf8] sm:$0xff]
    %v1740 = vld [vmem:[%s7 + $0x100] sm:$0xff]
    %v1741 = vld [vmem:[%s7 + $0x108] sm:$0xff]
    %v1742 = vld [vmem:[%s7 + $0x110] sm:$0xff]
    %v1743 = vld [vmem:[%s7 + $0x118] sm:$0xff]
    %v1744 = vld [vmem:[%s7 + $0x120] sm:$0xff]
    %v1745 = vld [vmem:[%s7 + $0x128] sm:$0xff]
    %v1746 = vld [vmem:[%s7 + $0x130] sm:$0xff]
    %v1747 = vld [vmem:[%s7 + $0x138] sm:$0xff]
    %v1748 = vld [vmem:[%s8] sm:$0x1]
    %v1750 = vperm.slane %v1748, 0
    %vm1752 = vcmask 523264
    %v1754 = vsel %vm1752, %v1707, 0
    %1756 = vmatpush.msra.mxu0 %v1723
    %1757 = vmatpush.msra.mxu0 %v1722
    %1758 = vmatpush.msra.mxu0 %v1721
    %1759 = vmatpush.msra.mxu0 %v1720
    %1760 = vmatpush.msra.mxu0 %v1719
    %1761 = vmatpush.msra.mxu0 %v1718
    %1762 = vmatpush.msra.mxu0 %v1717
    %1763 = vmatpush.msra.mxu0 %v1716
    %1764 = vmatpush.msra.mxu0 %v1715
    %1765 = vmatpush.msra.mxu0 %v1714
    %1766 = vmatpush.msra.mxu0 %v1713
    %1767 = vmatpush.msra.mxu0 %v1712
    %1768 = vmatpush.msra.mxu0 %v1711
    %1769 = vmatpush.msra.mxu0 %v1710
    %1770 = vmatpush.msra.mxu0 %v1709
    %1771 = vmatpush.msra.mxu0 %v1708
    %1772 = vmatmul.f32.gmra.mxu0 %v1705
    %v1773 = vpop.f32.mrf.mxu0
    %v1774 = vadd.f32 %v1750, %v1773
    %1775 = vdwg.mxu0
    %1776 = vmatpush.msra.mxu0 %v1739
    %1777 = vmatpush.msra.mxu0 %v1738
    %1778 = vmatpush.msra.mxu0 %v1737
    %1779 = vmatpush.msra.mxu0 %v1736
    %1780 = vmatpush.msra.mxu0 %v1735
    %1781 = vmatpush.msra.mxu0 %v1734
    %1782 = vmatpush.msra.mxu0 %v1733
    %1783 = vmatpush.msra.mxu0 %v1732
    %1784 = vmatpush.msra.mxu0 %v1731
    %1785 = vmatpush.msra.mxu0 %v1730
    %1786 = vmatpush.msra.mxu0 %v1729
    %1787 = vmatpush.msra.mxu0 %v1728
    %1788 = vmatpush.msra.mxu0 %v1727
    %1789 = vmatpush.msra.mxu0 %v1726
    %1790 = vmatpush.msra.mxu0 %v1725
    %1791 = vmatpush.msra.mxu0 %v1724
    %1792 = vmatmul.f32.gmra.mxu0 %v1706
    %v1793 = vpop.f32.mrf.mxu0
    %v1794 = vadd.f32 %v1774, %v1793
    %1795 = vdwg.mxu0
    %1796 = vmatpush.msra.mxu0 0.0
    %1797 = vmatpush.msra.mxu0 0.0
    %1798 = vmatpush.msra.mxu0 0.0
    %1799 = vmatpush.msra.mxu0 0.0
    %1800 = vmatpush.msra.mxu0 0.0
    %1801 = vmatpush.msra.mxu0 0.0
    %1802 = vmatpush.msra.mxu0 0.0
    %1803 = vmatpush.msra.mxu0 0.0
    %1804 = vmatpush.msra.mxu0 %v1747
    %1805 = vmatpush.msra.mxu0 %v1746
    %1806 = vmatpush.msra.mxu0 %v1745
    %1807 = vmatpush.msra.mxu0 %v1744
    %1808 = vmatpush.msra.mxu0 %v1743
    %1809 = vmatpush.msra.mxu0 %v1742
    %1810 = vmatpush.msra.mxu0 %v1741
    %1811 = vmatpush.msra.mxu0 %v1740
    %1812 = vmatmul.f32.gmra.mxu0 %v1754
    %v1813 = vpop.f32.mrf.mxu0
    %v1814 = vadd.f32 %v1794, %v1813
    %1815 = vdwg.mxu0
    %vm1816 = vcmask 402432
    %v1817 = vsel %vm1816, %v1814, 0.0
    %v1818 = vrot.slane %v1817, 4
    %v1819 = vadd.f32 %v1817, %v1818
    %v1820 = vrot.slane %v1819, 2
    %v1821 = vadd.f32 %v1819, %v1820
    %v1822 = vrot.slane %v1821, 1
    %v1823 = vadd.f32 %v1821, %v1822
    %v1824 = vrcp.pop 2.0
    %v1825 = vmul.f32 2.0, %v1824
    %v1826 = vsub.f32 1.0, %v1825
    %v1827 = vmul.f32 %v1824, %v1826
    %v1828 = vadd.f32 %v1824, %v1827
    %vm1829 = vweird.f32 %v1824
    %v1830 = vsel %vm1829, %v1824, %v1828
    %v1831 = vmul.f32 %v1823, %v1830
    %v1832 = vsub.f32 %v1814, %v1831
    %v1833 = vmul.f32 %v1832, %v1832
    %v1834 = vsel %vm1816, %v1833, 0.0
    %v1835 = vrot.slane %v1834, 4
    %v1836 = vadd.f32 %v1834, %v1835
    %v1837 = vrot.slane %v1836, 2
    %v1838 = vadd.f32 %v1836, %v1837
    %v1839 = vrot.slane %v1838, 1
    %v1840 = vadd.f32 %v1838, %v1839
    %v1841 = vmul.f32 %v1840, %v1830
    %v1842 = vadd.f32 %v1841, 1e-05
    %v1843 = vrsqrt.pop %v1842
    %v1844 = vmul.f32 %v1843, %v1842
    %v1845 = vmul.f32 %v1844, %v1843
    %v1846 = vmul.f32 0.5, %v1845
    %v1847 = vsub.f32 1.5, %v1846
    %v1848 = vmul.f32 %v1843, %v1847
    %vm1849 = vweird.f32 %v1842
    %vm1850 = vweird.f32 %v1843
    %vm1851 = vmor %vm1849, %vm1850
    %v1852 = vsel %vm1851, %v1843, %v1848
    %v1853 = vmul.f32 %v1832, %v1852
    %v1854 = vld [vmem:[%s9] sm:$0x1]
    %v1856 = vperm.slane %v1854, 0
    %v1858 = vmul.f32 %v1853, %v1856
    %v1859 = vld [vmem:[%s10] sm:$0x1]
    %v1861 = vperm.slane %v1859, 0
    %v1863 = vadd.f32 %v1858, %v1861
    %v1864 = vmax.f32 %v1863, 0.0
    %v1865 = vld [vmem:[%s11] sm:$0xff]
    %v1866 = vld [vmem:[%s11 + $0x8] sm:$0xff]
    %v1867 = vld [vmem:[%s11 + $0x10] sm:$0xff]
    %v1868 = vld [vmem:[%s11 + $0x18] sm:$0xff]
    %v1869 = vld [vmem:[%s11 + $0x20] sm:$0xff]
    %v1870 = vld [vmem:[%s11 + $0x28] sm:$0xff]
    %v1871 = vld [vmem:[%s11 + $0x30] sm:$0x3]
    %v1872 = vld [vmem:[%s12] sm:$0x1]
    %v1874 = vperm.slane %v1872, 0
    %v1877 = vsel %vm826, %v1864, 0
    %v1880 = vsel %vm567, %v1871, 0
    %1882 = vmatpush.msra.mxu0 0.0
    %1883 = vmatpush.msra.mxu0 0.0
    %1884 = vmatpush.msra.mxu0 0.0
    %1885 = vmatpush.msra.mxu0 0.0
    %1886 = vmatpush.msra.mxu0 0.0
    %1887 = vmatpush.msra.mxu0 0.0
    %1888 = vmatpush.msra.mxu0 0.0
    %1889 = vmatpush.msra.mxu0 0.0
    %1890 = vmatpush.msra.mxu0 0.0
    %1891 = vmatpush.msra.mxu0 %v1880
    %1892 = vmatpush.msra.mxu0 %v1870
    %1893 = vmatpush.msra.mxu0 %v1869
    %1894 = vmatpush.msra.mxu0 %v1868
    %1895 = vmatpush.msra.mxu0 %v1867
    %1896 = vmatpush.msra.mxu0 %v1866
    %1897 = vmatpush.msra.mxu0 %v1865
    %1898 = vmatmul.f32.gmra.mxu0 %v1877
    %v1899 = vpop.f32.mrf.mxu0
    %v1900 = vadd.f32 %v1874, %v1899
    %1901 = vdwg.mxu0
    %v1902 = vmax.f32 %v1900, 0.0
    %vm1903 = vcmask 74752
    %v1904 = vsel %vm1903, %v1902, -inf
    %1905 = vmax.xlane.f32.xlu0 %v1904
    %v1906 = vpop.xlane.xlu0 %1905
    %v1907 = vsub.f32 %v1902, %v1906
    %v1908 = vmul.f32 %v1907, 1.442695
    %v1909 = vpow.pop %v1908
    %v1910 = vsel %vm1903, %v1909, 0.0
    %1911 = vadd.xlane.f32.xlu0 %v1910
    %v1912 = vpop.xlane.xlu0 %1911
    %v1913 = vlog2.pop %v1912
    %v1914 = vmul.f32 %v1913, 0.6931472
    %v1915 = vadd.f32 %v1906, %v1914
    %v1916 = vsub.f32 %v1902, %v1915
    %1917 = vst.msk [vmem:[#allocation2] sm:$0x3] %vm1903, %v1916
    // Predicated region
    $region54: #{net_forward.1} parent=1 // pred_check
      _
    $region55: #{net_forward.1} parent=1 // pred_check_branch
      %1919 = sbr.rel (0) target = $region57
    $region56: #{net_forward.1} parent=1 // pred_region
      %1921 = vsyncadd [#allocation3], 0
      %s1923 = sshll.u32 [#allocation2], 4
      %s1924 = int_to_ptr.vmem [resolvable:$true] %s1923
      %s1925 = sshll.u32 %s13, 4
      %s1926 = int_to_ptr.hbm [resolvable:$true] %s1925
      %1928 = dma.vmem_to_hbm [thread:$0]  %s1924, 32, %s1926, [#allocation3]
    $region57: #{net_forward.1} parent=1 // pred_fallthru
      _
    // Predicated region
    $region58: #{net_forward.1} parent=1 // pred_check
      _
    $region59: #{net_forward.1} parent=1 // pred_check_branch
      %1930 = sbr.rel (0) target = $region61
    $region60: #{net_forward.1} parent=1 // pred_region
      %1932 = dma.done [#allocation3], 32
    $region61: #{net_forward.1} parent=1 // pred_fallthru
      _
    %1933 = vsyncpa [#allocation3], 1

</llo_original>
